<compile_context>
chip_gen: v7x
topology: tpu7x:2x2x1
jax: 0.10.0
libtpu: 0.0.40
codegen_flags: <defaults>
</compile_context>

<pallas_src>
import functools

import jax
import jax.numpy as jnp
import numpy as np
from jax import lax
from jax.experimental import pallas as pl
from jax.experimental.pallas import tpu as pltpu

LANE = 128  # TPU lane width


def _round_up(x, m):
    return ((x + m - 1) // m) * m


# ----------------------------------------------------------------------------
# Fused Pallas kernel: all LSTM layers + final dense projection
# ----------------------------------------------------------------------------
def _decoder_fused_kernel(*refs, hidden_dims, gate_strides, gate_widths, h_activ):
    """refs = enc, (w_ih, w_hh, b) * L, dense, out, seq_0..seq_{L-1}, gx.

    enc:    (1, E)        bf16 encoding
    w_ih:   (Din_l, GW_l) bf16, gate g at cols [g*GS_l, g*GS_l + H_l)
    w_hh:   (H_l, GW_l)   bf16, same column layout
    b:      (1, GW_l)     f32  (b_ih + b_hh, pre-folded)
    dense:  (H_last, OUT_P) bf16
    out:    (T, OUT_P)    f32 decoded sequence (lane-dense, sliced in wrapper)
    seq_l:  (T, H_l)      f32 VMEM scratch, per-layer hidden sequence
    gx:     (T, max GW)   f32 VMEM scratch, hoisted input projection
    """
    num_layers = len(hidden_dims)
    enc_ref = refs[0]
    lrefs = refs[1:1 + 3 * num_layers]
    dense_ref = refs[1 + 3 * num_layers]
    out_ref = refs[2 + 3 * num_layers]
    scratch = refs[3 + 3 * num_layers:]
    seq_refs = scratch[:num_layers]
    gx_ref = scratch[num_layers]

    T = out_ref.shape[0]
    max_gw = gx_ref.shape[1]

    for l in range(num_layers):            # static Python loop (trace time)
        H = hidden_dims[l]
        GS = gate_strides[l]               # gate column stride
        GW = gate_widths[l]                # total (padded) gates width
        packed = (4 * H <= LANE)           # all four gates in one 128-lane tile

        w_ih = lrefs[3 * l + 0][...]       # (Din, GW) bf16
        w_hh = lrefs[3 * l + 1][...]       # (H, GW)   bf16
        b = lrefs[3 * l + 2][...]          # (1, GW)   f32
        y_ref = seq_refs[l]

        if l == 0:
            # Decoder input is the encoding repeated over time -> the input
            # projection is a single (1,E)x(E,GW) matmul reused every step.
            gx_const = jnp.dot(enc_ref[...], w_ih,
                               preferred_element_type=jnp.float32) + b
        else:
            x_seq = seq_refs[l - 1][...]                       # (T, H_prev) f32
            if h_activ == "sigmoid":
                # Whole-block activation: off the serial critical path.
                x_seq = jax.nn.sigmoid(x_seq)
            proj = jnp.dot(x_seq.astype(jnp.bfloat16), w_ih,
                           preferred_element_type=jnp.float32) + b
            if GW == max_gw:
                gx_ref[...] = proj
            else:
                gx_ref[:, 0:GW] = proj

        def step(t, carry):
            h, c = carry                                       # (1, H) f32 each
            if l == 0:
                g_x = gx_const
            else:
                row = gx_ref[pl.ds(t, 1), :]                   # (1, max_gw)
                g_x = row if GW == max_gw else row[:, 0:GW]
            # Only the truly serial h @ W_hh stays inside the recurrence.
            # TODO(synk): pltpu.matmul_push_rhs to keep W_hh stationary in the
            # MXU if the bundle dump shows per-step re-pushes.
            gates = g_x + jnp.dot(h.astype(jnp.bfloat16), w_hh,
                                  preferred_element_type=jnp.float32)  # (1, GW) f32
            if packed:
                # One sigmoid + one tanh over the whole gates vreg (3 EUP
                # vreg-ops per step incl. tanh(c) instead of 5).
                sig = jax.nn.sigmoid(gates)
                th = jnp.tanh(gates)
                i_g = sig[:, 0 * GS:0 * GS + H]
                f_g = sig[:, 1 * GS:1 * GS + H]
                g_g = th[:, 2 * GS:2 * GS + H]
                o_g = sig[:, 3 * GS:3 * GS + H]
            else:
                i_g = jax.nn.sigmoid(gates[:, 0 * GS:0 * GS + H])
                f_g = jax.nn.sigmoid(gates[:, 1 * GS:1 * GS + H])
                g_g = jnp.tanh(gates[:, 2 * GS:2 * GS + H])
                o_g = jax.nn.sigmoid(gates[:, 3 * GS:3 * GS + H])
            c_new = f_g * c + i_g * g_g
            h_new = o_g * jnp.tanh(c_new)
            # Per-row store; batching 8 rows per vst is a minor win (vst slot
            # has slack) so it is deliberately skipped for simplicity.
            y_ref[pl.ds(t, 1), :] = h_new
            return (h_new, c_new)

        zeros = jnp.zeros((1, H), jnp.float32)
        # Partial unroll: keeps LLO scheduling visibility without blowing up
        # instruction footprint / vreg pressure for long sequences.
        lax.fori_loop(0, T, step, (zeros, zeros), unroll=min(T, 8))

    # Final dense projection over the whole sequence (lane-dense 128-wide out).
    y_last = seq_refs[num_layers - 1][...].astype(jnp.bfloat16)
    out_ref[...] = jnp.dot(y_last, dense_ref[...],
                           preferred_element_type=jnp.float32)


# ----------------------------------------------------------------------------
# One-time parameter preparation (off the per-call path)
# ----------------------------------------------------------------------------
def _pack_gates(w, hidden, stride, width):
    """(..., 4H) in PyTorch gate order [i,f,g,o] -> (..., width) with gate g
    placed at columns [g*stride, g*stride + hidden)."""
    out = jnp.zeros(w.shape[:-1] + (width,), w.dtype)
    for g in range(4):
        out = out.at[..., g * stride:g * stride + hidden].set(
            w[..., g * hidden:(g + 1) * hidden])
    return out


def prepare_decoder_params(params):
    """Pads / packs / casts weights once so nothing but the pallas_call sits on
    the per-call latency path."""
    layers = params["layers"]      # list of (w_ih_t (Din,4H), w_hh_t (H,4H), b (1,4H))
    dense = params["dense"]        # (H_last, out_dim)

    hidden_dims, strides, widths, flat = [], [], [], []
    for (w_ih, w_hh, b) in layers:
        H = w_hh.shape[0]
        # TODO(synk): generalize to hidden > 128 (tile the gate matmuls).
        assert H <= LANE, "hidden size must be <= 128 for this kernel"
        GS = H if 4 * H <= LANE else LANE          # packed vs per-gate-tile layout
        GW = max(LANE, _round_up(4 * GS, LANE))
        hidden_dims.append(H)
        strides.append(GS)
        widths.append(GW)
        flat.append(_pack_gates(w_ih, H, GS, GW).astype(jnp.bfloat16))
        flat.append(_pack_gates(w_hh, H, GS, GW).astype(jnp.bfloat16))
        flat.append(_pack_gates(b, H, GS, GW).astype(jnp.float32))

    out_dim = dense.shape[1]
    out_pad = _round_up(out_dim, LANE)
    dense_p = jnp.zeros((dense.shape[0], out_pad), jnp.bfloat16)
    dense_p = dense_p.at[:, :out_dim].set(dense.astype(jnp.bfloat16))

    meta = dict(hidden_dims=tuple(hidden_dims), gate_strides=tuple(strides),
                gate_widths=tuple(widths), out_dim=out_dim, out_pad=out_pad)
    return {"flat": flat, "dense": dense_p, "meta": meta}


# ----------------------------------------------------------------------------
# Wrapper around pallas_call
# ----------------------------------------------------------------------------
def decoder_forward(enc, seq_len, prepared, *, h_activ="sigmoid"):
    meta = prepared["meta"]
    hidden_dims = meta["hidden_dims"]
    num_layers = len(hidden_dims)
    T = int(seq_len)
    max_gw = max(meta["gate_widths"])

    enc_p = jnp.asarray(enc, jnp.float32).reshape(1, -1).astype(jnp.bfloat16)

    kernel = functools.partial(
        _decoder_fused_kernel,
        hidden_dims=hidden_dims,
        gate_strides=meta["gate_strides"],
        gate_widths=meta["gate_widths"],
        h_activ=h_activ)

    vmem = pl.BlockSpec(memory_space=pltpu.MemorySpace.VMEM)
    # For long sequences move these to bf16 or chunk T (VMEM guardrail).
    scratch = [pltpu.VMEM((T, h), jnp.float32) for h in hidden_dims]
    scratch.append(pltpu.VMEM((T, max_gw), jnp.float32))

    out_p = pl.pallas_call(
        kernel,
        out_shape=jax.ShapeDtypeStruct((T, meta["out_pad"]), jnp.float32),
        in_specs=[vmem] * (2 + 3 * num_layers),
        out_specs=vmem,
        scratch_shapes=scratch,
        compiler_params=pltpu.CompilerParams(vmem_limit_bytes=32 * 1024 * 1024),
    )(enc_p, *prepared["flat"], prepared["dense"])
    return out_p[:, :meta["out_dim"]]


# ----------------------------------------------------------------------------
# Parameter construction (mirrors nn.LSTM / nn.Parameter init shapes)
# ----------------------------------------------------------------------------
def init_lstm_params(key, in_dim, hidden):
    bound = 1.0 / np.sqrt(hidden)
    k0, k1, k2, k3 = jax.random.split(key, 4)
    # PyTorch stores weight_ih as (4H, in_dim); we keep the transpose, gate
    # order [i, f, g, o].
    w_ih_t = jax.random.uniform(k0, (in_dim, 4 * hidden), jnp.float32, -bound, bound)
    w_hh_t = jax.random.uniform(k1, (hidden, 4 * hidden), jnp.float32, -bound, bound)
    b_ih = jax.random.uniform(k2, (4 * hidden,), jnp.float32, -bound, bound)
    b_hh = jax.random.uniform(k3, (4 * hidden,), jnp.float32, -bound, bound)
    b = (b_ih + b_hh).reshape(1, 4 * hidden)
    return (w_ih_t, w_hh_t, b)


def init_decoder_params(key, input_dim, out_dim, h_dims):
    layer_dims = [input_dim] + list(h_dims) + [h_dims[-1]]
    num_layers = len(layer_dims) - 1
    keys = jax.random.split(key, num_layers + 1)
    layers = [init_lstm_params(keys[i], layer_dims[i], layer_dims[i + 1])
              for i in range(num_layers)]
    # nn.Parameter(torch.rand((layer_dims[-1], out_dim)))  -> uniform [0, 1)
    dense = jax.random.uniform(keys[-1], (layer_dims[-1], out_dim), jnp.float32)
    return {"layers": layers, "dense": dense}


# ----------------------------------------------------------------------------
# Pure-JAX reference (correctness check, f32 weights)
# ----------------------------------------------------------------------------
def _lstm_ref(x_seq, w_ih_t, w_hh_t, b):
    H = w_hh_t.shape[0]

    def step(carry, x_t):
        h, c = carry
        gates = x_t @ w_ih_t + h @ w_hh_t + b[0]
        i_g = jax.nn.sigmoid(gates[0 * H:1 * H])
        f_g = jax.nn.sigmoid(gates[1 * H:2 * H])
        g_g = jnp.tanh(gates[2 * H:3 * H])
        o_g = jax.nn.sigmoid(gates[3 * H:4 * H])
        c_new = f_g * c + i_g * g_g
        h_new = o_g * jnp.tanh(c_new)
        return (h_new, c_new), h_new

    init = (jnp.zeros(H, jnp.float32), jnp.zeros(H, jnp.float32))
    _, ys = lax.scan(step, init, x_seq)
    return ys


def decoder_forward_ref(enc, seq_len, params, *, h_activ="sigmoid"):
    x = jnp.tile(jnp.asarray(enc, jnp.float32).reshape(1, -1), (seq_len, 1))
    layers = params["layers"]
    for idx, (w_ih, w_hh, b) in enumerate(layers):
        x = _lstm_ref(x, w_ih, w_hh, b)
        if h_activ == "sigmoid" and idx < len(layers) - 1:
            x = jax.nn.sigmoid(x)
    return x @ params["dense"]


# ----------------------------------------------------------------------------
if __name__ == "__main__":
    input_dim = 16     # encoding dimension (Decoder input)
    out_dim = 8        # reconstruction dimension
    h_dims = [32]      # -> layer_dims [16, 32, 32], num_layers = 2
    seq_len = 8

    key = jax.random.PRNGKey(0)
    k_param, k_x = jax.random.split(key)

    params = init_decoder_params(k_param, input_dim, out_dim, h_dims)
    enc = jax.random.normal(k_x, (input_dim,), jnp.float32)

    # One-time weight packing / bf16 cast (off the per-call path).
    prepared = prepare_decoder_params(params)

    out = jax.block_until_ready(decoder_forward(enc, seq_len, prepared))
    ref = jax.block_until_ready(decoder_forward_ref(enc, seq_len, params))

    assert out.shape == (seq_len, out_dim), out.shape
    assert out.dtype == jnp.float32, out.dtype
    # Kernel stores weights / matmul LHS in bf16 (per perf review) while the
    # reference runs in f32, so the comparison tolerance is loosened.
    np.testing.assert_allclose(np.asarray(out), np.asarray(ref),
                               rtol=3e-2, atol=3e-2)

    print("KERNEL_OK")
</pallas_src>

<mosaic_0001>
module attributes {stable_mosaic.version = 11 : i64} {
  func.func @_decoder_fused_kernel(%arg0: memref<1x16xbf16, #tpu.memory_space<vmem>>, %arg1: memref<16x128xbf16, #tpu.memory_space<vmem>>, %arg2: memref<32x128xbf16, #tpu.memory_space<vmem>>, %arg3: memref<1x128xf32, #tpu.memory_space<vmem>>, %arg4: memref<32x128xbf16, #tpu.memory_space<vmem>>, %arg5: memref<32x128xbf16, #tpu.memory_space<vmem>>, %arg6: memref<1x128xf32, #tpu.memory_space<vmem>>, %arg7: memref<32x128xbf16, #tpu.memory_space<vmem>>, %arg8: memref<8x128xf32, #tpu.memory_space<vmem>>, %arg9: memref<8x32xf32, #tpu.memory_space<vmem>>, %arg10: memref<8x32xf32, #tpu.memory_space<vmem>>, %arg11: memref<8x128xf32, #tpu.memory_space<vmem>>) attributes {dimension_semantics = [], scalar_prefetch = 0 : i64, scratch_operands = 3 : i64, tpu.core_type = #tpu.core_type<tc>} {
    %c0 = arith.constant 0 : index
    %c0_0 = arith.constant 0 : index
    %0 = vector.load %arg1[%c0, %c0_0] : memref<16x128xbf16, #tpu.memory_space<vmem>>, vector<16x128xbf16>
    %c0_1 = arith.constant 0 : index
    %c0_2 = arith.constant 0 : index
    %1 = vector.load %arg2[%c0_1, %c0_2] : memref<32x128xbf16, #tpu.memory_space<vmem>>, vector<32x128xbf16>
    %c0_3 = arith.constant 0 : index
    %c0_4 = arith.constant 0 : index
    %2 = vector.load %arg3[%c0_3, %c0_4] : memref<1x128xf32, #tpu.memory_space<vmem>>, vector<1x128xf32>
    %c0_5 = arith.constant 0 : index
    %c0_6 = arith.constant 0 : index
    %3 = vector.load %arg0[%c0_5, %c0_6] : memref<1x16xbf16, #tpu.memory_space<vmem>>, vector<1x16xbf16>
    %cst = arith.constant dense<0.000000e+00> : vector<1x128xf32>
    %4 = tpu.matmul %3, %0, %cst {dimension_numbers = #tpu.dot_dimension_numbers<[1], [0], [0], [1], [0, 0, 1, 1], [], []>} : vector<1x16xbf16>, vector<16x128xbf16>, vector<1x128xf32> -> vector<1x128xf32>
    %5 = arith.addf %4, %2 : vector<1x128xf32>
    %cst_7 = arith.constant 0.000000e+00 : f32
    %6 = vector.broadcast %cst_7 : f32 to vector<1x32xf32>
    %c0_i32 = arith.constant 0 : i32
    %7 = arith.truncf %6 : vector<1x32xf32> to vector<1x32xbf16>
    %cst_8 = arith.constant dense<0.000000e+00> : vector<1x128xf32>
    %8 = tpu.matmul %7, %1, %cst_8 {dimension_numbers = #tpu.dot_dimension_numbers<[1], [0], [0], [1], [0, 0, 1, 1], [], []>} : vector<1x32xbf16>, vector<32x128xbf16>, vector<1x128xf32> -> vector<1x128xf32>
    %9 = arith.addf %5, %8 : vector<1x128xf32>
    %10 = arith.negf %9 : vector<1x128xf32>
    %11 = math.exp %10 : vector<1x128xf32>
    %cst_9 = arith.constant 1.000000e+00 : f32
    %12 = vector.broadcast %cst_9 : f32 to vector<1x128xf32>
    %13 = arith.addf %12, %11 : vector<1x128xf32>
    %14 = arith.divf %12, %13 : vector<1x128xf32>
    %15 = math.tanh %9 : vector<1x128xf32>
    %16 = vector.extract_strided_slice %14 {offsets = [0, 0], sizes = [1, 32], strides = [1, 1]} : vector<1x128xf32> to vector<1x32xf32>
    %17 = vector.extract_strided_slice %14 {offsets = [0, 32], sizes = [1, 32], strides = [1, 1]} : vector<1x128xf32> to vector<1x32xf32>
    %18 = vector.extract_strided_slice %15 {offsets = [0, 64], sizes = [1, 32], strides = [1, 1]} : vector<1x128xf32> to vector<1x32xf32>
    %19 = vector.extract_strided_slice %14 {offsets = [0, 96], sizes = [1, 32], strides = [1, 1]} : vector<1x128xf32> to vector<1x32xf32>
    %20 = arith.mulf %17, %6 : vector<1x32xf32>
    %21 = arith.mulf %16, %18 : vector<1x32xf32>
    %22 = arith.addf %20, %21 : vector<1x32xf32>
    %23 = math.tanh %22 : vector<1x32xf32>
    %24 = arith.mulf %19, %23 : vector<1x32xf32>
    %25 = arith.index_cast %c0_i32 : i32 to index
    %c0_10 = arith.constant 0 : index
    %26 = vector.load %arg9[%25, %c0_10] : memref<8x32xf32, #tpu.memory_space<vmem>>, vector<1x32xf32>
    tpu.vector_store %arg9[%25, %c0_10], %24 {strides = array<i32>} : memref<8x32xf32, #tpu.memory_space<vmem>>, vector<1x32xf32>,
    %c1_i32 = arith.constant 1 : i32
    %27 = arith.truncf %24 : vector<1x32xf32> to vector<1x32xbf16>
    %cst_11 = arith.constant dense<0.000000e+00> : vector<1x128xf32>
    %28 = tpu.matmul %27, %1, %cst_11 {dimension_numbers = #tpu.dot_dimension_numbers<[1], [0], [0], [1], [0, 0, 1, 1], [], []>} : vector<1x32xbf16>, vector<32x128xbf16>, vector<1x128xf32> -> vector<1x128xf32>
    %29 = arith.addf %5, %28 : vector<1x128xf32>
    %30 = arith.negf %29 : vector<1x128xf32>
    %31 = math.exp %30 : vector<1x128xf32>
    %cst_12 = arith.constant 1.000000e+00 : f32
    %32 = vector.broadcast %cst_12 : f32 to vector<1x128xf32>
    %33 = arith.addf %32, %31 : vector<1x128xf32>
    %34 = arith.divf %32, %33 : vector<1x128xf32>
    %35 = math.tanh %29 : vector<1x128xf32>
    %36 = vector.extract_strided_slice %34 {offsets = [0, 0], sizes = [1, 32], strides = [1, 1]} : vector<1x128xf32> to vector<1x32xf32>
    %37 = vector.extract_strided_slice %34 {offsets = [0, 32], sizes = [1, 32], strides = [1, 1]} : vector<1x128xf32> to vector<1x32xf32>
    %38 = vector.extract_strided_slice %35 {offsets = [0, 64], sizes = [1, 32], strides = [1, 1]} : vector<1x128xf32> to vector<1x32xf32>
    %39 = vector.extract_strided_slice %34 {offsets = [0, 96], sizes = [1, 32], strides = [1, 1]} : vector<1x128xf32> to vector<1x32xf32>
    %40 = arith.mulf %37, %22 : vector<1x32xf32>
    %41 = arith.mulf %36, %38 : vector<1x32xf32>
    %42 = arith.addf %40, %41 : vector<1x32xf32>
    %43 = math.tanh %42 : vector<1x32xf32>
    %44 = arith.mulf %39, %43 : vector<1x32xf32>
    %45 = arith.index_cast %c1_i32 : i32 to index
    %c0_13 = arith.constant 0 : index
    %46 = vector.load %arg9[%45, %c0_13] : memref<8x32xf32, #tpu.memory_space<vmem>>, vector<1x32xf32>
    tpu.vector_store %arg9[%45, %c0_13], %44 {strides = array<i32>} : memref<8x32xf32, #tpu.memory_space<vmem>>, vector<1x32xf32>,
    %c2_i32 = arith.constant 2 : i32
    %47 = arith.truncf %44 : vector<1x32xf32> to vector<1x32xbf16>
    %cst_14 = arith.constant dense<0.000000e+00> : vector<1x128xf32>
    %48 = tpu.matmul %47, %1, %cst_14 {dimension_numbers = #tpu.dot_dimension_numbers<[1], [0], [0], [1], [0, 0, 1, 1], [], []>} : vector<1x32xbf16>, vector<32x128xbf16>, vector<1x128xf32> -> vector<1x128xf32>
    %49 = arith.addf %5, %48 : vector<1x128xf32>
    %50 = arith.negf %49 : vector<1x128xf32>
    %51 = math.exp %50 : vector<1x128xf32>
    %cst_15 = arith.constant 1.000000e+00 : f32
    %52 = vector.broadcast %cst_15 : f32 to vector<1x128xf32>
    %53 = arith.addf %52, %51 : vector<1x128xf32>
    %54 = arith.divf %52, %53 : vector<1x128xf32>
    %55 = math.tanh %49 : vector<1x128xf32>
    %56 = vector.extract_strided_slice %54 {offsets = [0, 0], sizes = [1, 32], strides = [1, 1]} : vector<1x128xf32> to vector<1x32xf32>
    %57 = vector.extract_strided_slice %54 {offsets = [0, 32], sizes = [1, 32], strides = [1, 1]} : vector<1x128xf32> to vector<1x32xf32>
    %58 = vector.extract_strided_slice %55 {offsets = [0, 64], sizes = [1, 32], strides = [1, 1]} : vector<1x128xf32> to vector<1x32xf32>
    %59 = vector.extract_strided_slice %54 {offsets = [0, 96], sizes = [1, 32], strides = [1, 1]} : vector<1x128xf32> to vector<1x32xf32>
    %60 = arith.mulf %57, %42 : vector<1x32xf32>
    %61 = arith.mulf %56, %58 : vector<1x32xf32>
    %62 = arith.addf %60, %61 : vector<1x32xf32>
    %63 = math.tanh %62 : vector<1x32xf32>
    %64 = arith.mulf %59, %63 : vector<1x32xf32>
    %65 = arith.index_cast %c2_i32 : i32 to index
    %c0_16 = arith.constant 0 : index
    %66 = vector.load %arg9[%65, %c0_16] : memref<8x32xf32, #tpu.memory_space<vmem>>, vector<1x32xf32>
    tpu.vector_store %arg9[%65, %c0_16], %64 {strides = array<i32>} : memref<8x32xf32, #tpu.memory_space<vmem>>, vector<1x32xf32>,
    %c3_i32 = arith.constant 3 : i32
    %67 = arith.truncf %64 : vector<1x32xf32> to vector<1x32xbf16>
    %cst_17 = arith.constant dense<0.000000e+00> : vector<1x128xf32>
    %68 = tpu.matmul %67, %1, %cst_17 {dimension_numbers = #tpu.dot_dimension_numbers<[1], [0], [0], [1], [0, 0, 1, 1], [], []>} : vector<1x32xbf16>, vector<32x128xbf16>, vector<1x128xf32> -> vector<1x128xf32>
    %69 = arith.addf %5, %68 : vector<1x128xf32>
    %70 = arith.negf %69 : vector<1x128xf32>
    %71 = math.exp %70 : vector<1x128xf32>
    %cst_18 = arith.constant 1.000000e+00 : f32
    %72 = vector.broadcast %cst_18 : f32 to vector<1x128xf32>
    %73 = arith.addf %72, %71 : vector<1x128xf32>
    %74 = arith.divf %72, %73 : vector<1x128xf32>
    %75 = math.tanh %69 : vector<1x128xf32>
    %76 = vector.extract_strided_slice %74 {offsets = [0, 0], sizes = [1, 32], strides = [1, 1]} : vector<1x128xf32> to vector<1x32xf32>
    %77 = vector.extract_strided_slice %74 {offsets = [0, 32], sizes = [1, 32], strides = [1, 1]} : vector<1x128xf32> to vector<1x32xf32>
    %78 = vector.extract_strided_slice %75 {offsets = [0, 64], sizes = [1, 32], strides = [1, 1]} : vector<1x128xf32> to vector<1x32xf32>
    %79 = vector.extract_strided_slice %74 {offsets = [0, 96], sizes = [1, 32], strides = [1, 1]} : vector<1x128xf32> to vector<1x32xf32>
    %80 = arith.mulf %77, %62 : vector<1x32xf32>
    %81 = arith.mulf %76, %78 : vector<1x32xf32>
    %82 = arith.addf %80, %81 : vector<1x32xf32>
    %83 = math.tanh %82 : vector<1x32xf32>
    %84 = arith.mulf %79, %83 : vector<1x32xf32>
    %85 = arith.index_cast %c3_i32 : i32 to index
    %c0_19 = arith.constant 0 : index
    %86 = vector.load %arg9[%85, %c0_19] : memref<8x32xf32, #tpu.memory_space<vmem>>, vector<1x32xf32>
    tpu.vector_store %arg9[%85, %c0_19], %84 {strides = array<i32>} : memref<8x32xf32, #tpu.memory_space<vmem>>, vector<1x32xf32>,
    %c4_i32 = arith.constant 4 : i32
    %87 = arith.truncf %84 : vector<1x32xf32> to vector<1x32xbf16>
    %cst_20 = arith.constant dense<0.000000e+00> : vector<1x128xf32>
    %88 = tpu.matmul %87, %1, %cst_20 {dimension_numbers = #tpu.dot_dimension_numbers<[1], [0], [0], [1], [0, 0, 1, 1], [], []>} : vector<1x32xbf16>, vector<32x128xbf16>, vector<1x128xf32> -> vector<1x128xf32>
    %89 = arith.addf %5, %88 : vector<1x128xf32>
    %90 = arith.negf %89 : vector<1x128xf32>
    %91 = math.exp %90 : vector<1x128xf32>
    %cst_21 = arith.constant 1.000000e+00 : f32
    %92 = vector.broadcast %cst_21 : f32 to vector<1x128xf32>
    %93 = arith.addf %92, %91 : vector<1x128xf32>
    %94 = arith.divf %92, %93 : vector<1x128xf32>
    %95 = math.tanh %89 : vector<1x128xf32>
    %96 = vector.extract_strided_slice %94 {offsets = [0, 0], sizes = [1, 32], strides = [1, 1]} : vector<1x128xf32> to vector<1x32xf32>
    %97 = vector.extract_strided_slice %94 {offsets = [0, 32], sizes = [1, 32], strides = [1, 1]} : vector<1x128xf32> to vector<1x32xf32>
    %98 = vector.extract_strided_slice %95 {offsets = [0, 64], sizes = [1, 32], strides = [1, 1]} : vector<1x128xf32> to vector<1x32xf32>
    %99 = vector.extract_strided_slice %94 {offsets = [0, 96], sizes = [1, 32], strides = [1, 1]} : vector<1x128xf32> to vector<1x32xf32>
    %100 = arith.mulf %97, %82 : vector<1x32xf32>
    %101 = arith.mulf %96, %98 : vector<1x32xf32>
    %102 = arith.addf %100, %101 : vector<1x32xf32>
    %103 = math.tanh %102 : vector<1x32xf32>
    %104 = arith.mulf %99, %103 : vector<1x32xf32>
    %105 = arith.index_cast %c4_i32 : i32 to index
    %c0_22 = arith.constant 0 : index
    %106 = vector.load %arg9[%105, %c0_22] : memref<8x32xf32, #tpu.memory_space<vmem>>, vector<1x32xf32>
    tpu.vector_store %arg9[%105, %c0_22], %104 {strides = array<i32>} : memref<8x32xf32, #tpu.memory_space<vmem>>, vector<1x32xf32>,
    %c5_i32 = arith.constant 5 : i32
    %107 = arith.truncf %104 : vector<1x32xf32> to vector<1x32xbf16>
    %cst_23 = arith.constant dense<0.000000e+00> : vector<1x128xf32>
    %108 = tpu.matmul %107, %1, %cst_23 {dimension_numbers = #tpu.dot_dimension_numbers<[1], [0], [0], [1], [0, 0, 1, 1], [], []>} : vector<1x32xbf16>, vector<32x128xbf16>, vector<1x128xf32> -> vector<1x128xf32>
    %109 = arith.addf %5, %108 : vector<1x128xf32>
    %110 = arith.negf %109 : vector<1x128xf32>
    %111 = math.exp %110 : vector<1x128xf32>
    %cst_24 = arith.constant 1.000000e+00 : f32
    %112 = vector.broadcast %cst_24 : f32 to vector<1x128xf32>
    %113 = arith.addf %112, %111 : vector<1x128xf32>
    %114 = arith.divf %112, %113 : vector<1x128xf32>
    %115 = math.tanh %109 : vector<1x128xf32>
    %116 = vector.extract_strided_slice %114 {offsets = [0, 0], sizes = [1, 32], strides = [1, 1]} : vector<1x128xf32> to vector<1x32xf32>
    %117 = vector.extract_strided_slice %114 {offsets = [0, 32], sizes = [1, 32], strides = [1, 1]} : vector<1x128xf32> to vector<1x32xf32>
    %118 = vector.extract_strided_slice %115 {offsets = [0, 64], sizes = [1, 32], strides = [1, 1]} : vector<1x128xf32> to vector<1x32xf32>
    %119 = vector.extract_strided_slice %114 {offsets = [0, 96], sizes = [1, 32], strides = [1, 1]} : vector<1x128xf32> to vector<1x32xf32>
    %120 = arith.mulf %117, %102 : vector<1x32xf32>
    %121 = arith.mulf %116, %118 : vector<1x32xf32>
    %122 = arith.addf %120, %121 : vector<1x32xf32>
    %123 = math.tanh %122 : vector<1x32xf32>
    %124 = arith.mulf %119, %123 : vector<1x32xf32>
    %125 = arith.index_cast %c5_i32 : i32 to index
    %c0_25 = arith.constant 0 : index
    %126 = vector.load %arg9[%125, %c0_25] : memref<8x32xf32, #tpu.memory_space<vmem>>, vector<1x32xf32>
    tpu.vector_store %arg9[%125, %c0_25], %124 {strides = array<i32>} : memref<8x32xf32, #tpu.memory_space<vmem>>, vector<1x32xf32>,
    %c6_i32 = arith.constant 6 : i32
    %127 = arith.truncf %124 : vector<1x32xf32> to vector<1x32xbf16>
    %cst_26 = arith.constant dense<0.000000e+00> : vector<1x128xf32>
    %128 = tpu.matmul %127, %1, %cst_26 {dimension_numbers = #tpu.dot_dimension_numbers<[1], [0], [0], [1], [0, 0, 1, 1], [], []>} : vector<1x32xbf16>, vector<32x128xbf16>, vector<1x128xf32> -> vector<1x128xf32>
    %129 = arith.addf %5, %128 : vector<1x128xf32>
    %130 = arith.negf %129 : vector<1x128xf32>
    %131 = math.exp %130 : vector<1x128xf32>
    %cst_27 = arith.constant 1.000000e+00 : f32
    %132 = vector.broadcast %cst_27 : f32 to vector<1x128xf32>
    %133 = arith.addf %132, %131 : vector<1x128xf32>
    %134 = arith.divf %132, %133 : vector<1x128xf32>
    %135 = math.tanh %129 : vector<1x128xf32>
    %136 = vector.extract_strided_slice %134 {offsets = [0, 0], sizes = [1, 32], strides = [1, 1]} : vector<1x128xf32> to vector<1x32xf32>
    %137 = vector.extract_strided_slice %134 {offsets = [0, 32], sizes = [1, 32], strides = [1, 1]} : vector<1x128xf32> to vector<1x32xf32>
    %138 = vector.extract_strided_slice %135 {offsets = [0, 64], sizes = [1, 32], strides = [1, 1]} : vector<1x128xf32> to vector<1x32xf32>
    %139 = vector.extract_strided_slice %134 {offsets = [0, 96], sizes = [1, 32], strides = [1, 1]} : vector<1x128xf32> to vector<1x32xf32>
    %140 = arith.mulf %137, %122 : vector<1x32xf32>
    %141 = arith.mulf %136, %138 : vector<1x32xf32>
    %142 = arith.addf %140, %141 : vector<1x32xf32>
    %143 = math.tanh %142 : vector<1x32xf32>
    %144 = arith.mulf %139, %143 : vector<1x32xf32>
    %145 = arith.index_cast %c6_i32 : i32 to index
    %c0_28 = arith.constant 0 : index
    %146 = vector.load %arg9[%145, %c0_28] : memref<8x32xf32, #tpu.memory_space<vmem>>, vector<1x32xf32>
    tpu.vector_store %arg9[%145, %c0_28], %144 {strides = array<i32>} : memref<8x32xf32, #tpu.memory_space<vmem>>, vector<1x32xf32>,
    %c7_i32 = arith.constant 7 : i32
    %147 = arith.truncf %144 : vector<1x32xf32> to vector<1x32xbf16>
    %cst_29 = arith.constant dense<0.000000e+00> : vector<1x128xf32>
    %148 = tpu.matmul %147, %1, %cst_29 {dimension_numbers = #tpu.dot_dimension_numbers<[1], [0], [0], [1], [0, 0, 1, 1], [], []>} : vector<1x32xbf16>, vector<32x128xbf16>, vector<1x128xf32> -> vector<1x128xf32>
    %149 = arith.addf %5, %148 : vector<1x128xf32>
    %150 = arith.negf %149 : vector<1x128xf32>
    %151 = math.exp %150 : vector<1x128xf32>
    %cst_30 = arith.constant 1.000000e+00 : f32
    %152 = vector.broadcast %cst_30 : f32 to vector<1x128xf32>
    %153 = arith.addf %152, %151 : vector<1x128xf32>
    %154 = arith.divf %152, %153 : vector<1x128xf32>
    %155 = math.tanh %149 : vector<1x128xf32>
    %156 = vector.extract_strided_slice %154 {offsets = [0, 0], sizes = [1, 32], strides = [1, 1]} : vector<1x128xf32> to vector<1x32xf32>
    %157 = vector.extract_strided_slice %154 {offsets = [0, 32], sizes = [1, 32], strides = [1, 1]} : vector<1x128xf32> to vector<1x32xf32>
    %158 = vector.extract_strided_slice %155 {offsets = [0, 64], sizes = [1, 32], strides = [1, 1]} : vector<1x128xf32> to vector<1x32xf32>
    %159 = vector.extract_strided_slice %154 {offsets = [0, 96], sizes = [1, 32], strides = [1, 1]} : vector<1x128xf32> to vector<1x32xf32>
    %160 = arith.mulf %157, %142 : vector<1x32xf32>
    %161 = arith.mulf %156, %158 : vector<1x32xf32>
    %162 = arith.addf %160, %161 : vector<1x32xf32>
    %163 = math.tanh %162 : vector<1x32xf32>
    %164 = arith.mulf %159, %163 : vector<1x32xf32>
    %165 = arith.index_cast %c7_i32 : i32 to index
    %c0_31 = arith.constant 0 : index
    %166 = vector.load %arg9[%165, %c0_31] : memref<8x32xf32, #tpu.memory_space<vmem>>, vector<1x32xf32>
    tpu.vector_store %arg9[%165, %c0_31], %164 {strides = array<i32>} : memref<8x32xf32, #tpu.memory_space<vmem>>, vector<1x32xf32>,
    %c8_i32 = arith.constant 8 : i32
    %c0_32 = arith.constant 0 : index
    %c0_33 = arith.constant 0 : index
    %167 = vector.load %arg4[%c0_32, %c0_33] : memref<32x128xbf16, #tpu.memory_space<vmem>>, vector<32x128xbf16>
    %c0_34 = arith.constant 0 : index
    %c0_35 = arith.constant 0 : index
    %168 = vector.load %arg5[%c0_34, %c0_35] : memref<32x128xbf16, #tpu.memory_space<vmem>>, vector<32x128xbf16>
    %c0_36 = arith.constant 0 : index
    %c0_37 = arith.constant 0 : index
    %169 = vector.load %arg6[%c0_36, %c0_37] : memref<1x128xf32, #tpu.memory_space<vmem>>, vector<1x128xf32>
    %c0_38 = arith.constant 0 : index
    %c0_39 = arith.constant 0 : index
    %170 = vector.load %arg9[%c0_38, %c0_39] : memref<8x32xf32, #tpu.memory_space<vmem>>, vector<8x32xf32>
    %171 = arith.negf %170 : vector<8x32xf32>
    %172 = math.exp %171 : vector<8x32xf32>
    %cst_40 = arith.constant 1.000000e+00 : f32
    %173 = vector.broadcast %cst_40 : f32 to vector<8x32xf32>
    %174 = arith.addf %173, %172 : vector<8x32xf32>
    %175 = arith.divf %173, %174 : vector<8x32xf32>
    %176 = arith.truncf %175 : vector<8x32xf32> to vector<8x32xbf16>
    %cst_41 = arith.constant dense<0.000000e+00> : vector<8x128xf32>
    %177 = tpu.matmul %176, %167, %cst_41 {dimension_numbers = #tpu.dot_dimension_numbers<[1], [0], [0], [1], [0, 0, 1, 1], [], []>} : vector<8x32xbf16>, vector<32x128xbf16>, vector<8x128xf32> -> vector<8x128xf32>
    %178 = vector.broadcast %169 : vector<1x128xf32> to vector<8x128xf32>
    %179 = arith.addf %177, %178 : vector<8x128xf32>
    %c0_42 = arith.constant 0 : index
    %c0_43 = arith.constant 0 : index
    %180 = vector.load %arg11[%c0_42, %c0_43] : memref<8x128xf32, #tpu.memory_space<vmem>>, vector<8x128xf32>
    tpu.vector_store %arg11[%c0_42, %c0_43], %179 {strides = array<i32>} : memref<8x128xf32, #tpu.memory_space<vmem>>, vector<8x128xf32>,
    %cst_44 = arith.constant 0.000000e+00 : f32
    %181 = vector.broadcast %cst_44 : f32 to vector<1x32xf32>
    %c0_i32_45 = arith.constant 0 : i32
    %182 = arith.index_cast %c0_i32_45 : i32 to index
    %c0_46 = arith.constant 0 : index
    %183 = vector.load %arg11[%182, %c0_46] : memref<8x128xf32, #tpu.memory_space<vmem>>, vector<1x128xf32>
    %184 = arith.truncf %181 : vector<1x32xf32> to vector<1x32xbf16>
    %cst_47 = arith.constant dense<0.000000e+00> : vector<1x128xf32>
    %185 = tpu.matmul %184, %168, %cst_47 {dimension_numbers = #tpu.dot_dimension_numbers<[1], [0], [0], [1], [0, 0, 1, 1], [], []>} : vector<1x32xbf16>, vector<32x128xbf16>, vector<1x128xf32> -> vector<1x128xf32>
    %186 = arith.addf %183, %185 : vector<1x128xf32>
    %187 = arith.negf %186 : vector<1x128xf32>
    %188 = math.exp %187 : vector<1x128xf32>
    %cst_48 = arith.constant 1.000000e+00 : f32
    %189 = vector.broadcast %cst_48 : f32 to vector<1x128xf32>
    %190 = arith.addf %189, %188 : vector<1x128xf32>
    %191 = arith.divf %189, %190 : vector<1x128xf32>
    %192 = math.tanh %186 : vector<1x128xf32>
    %193 = vector.extract_strided_slice %191 {offsets = [0, 0], sizes = [1, 32], strides = [1, 1]} : vector<1x128xf32> to vector<1x32xf32>
    %194 = vector.extract_strided_slice %191 {offsets = [0, 32], sizes = [1, 32], strides = [1, 1]} : vector<1x128xf32> to vector<1x32xf32>
    %195 = vector.extract_strided_slice %192 {offsets = [0, 64], sizes = [1, 32], strides = [1, 1]} : vector<1x128xf32> to vector<1x32xf32>
    %196 = vector.extract_strided_slice %191 {offsets = [0, 96], sizes = [1, 32], strides = [1, 1]} : vector<1x128xf32> to vector<1x32xf32>
    %197 = arith.mulf %194, %181 : vector<1x32xf32>
    %198 = arith.mulf %193, %195 : vector<1x32xf32>
    %199 = arith.addf %197, %198 : vector<1x32xf32>
    %200 = math.tanh %199 : vector<1x32xf32>
    %201 = arith.mulf %196, %200 : vector<1x32xf32>
    %202 = arith.index_cast %c0_i32_45 : i32 to index
    %c0_49 = arith.constant 0 : index
    %203 = vector.load %arg10[%202, %c0_49] : memref<8x32xf32, #tpu.memory_space<vmem>>, vector<1x32xf32>
    tpu.vector_store %arg10[%202, %c0_49], %201 {strides = array<i32>} : memref<8x32xf32, #tpu.memory_space<vmem>>, vector<1x32xf32>,
    %c1_i32_50 = arith.constant 1 : i32
    %204 = arith.index_cast %c1_i32_50 : i32 to index
    %c0_51 = arith.constant 0 : index
    %205 = vector.load %arg11[%204, %c0_51] : memref<8x128xf32, #tpu.memory_space<vmem>>, vector<1x128xf32>
    %206 = arith.truncf %201 : vector<1x32xf32> to vector<1x32xbf16>
    %cst_52 = arith.constant dense<0.000000e+00> : vector<1x128xf32>
    %207 = tpu.matmul %206, %168, %cst_52 {dimension_numbers = #tpu.dot_dimension_numbers<[1], [0], [0], [1], [0, 0, 1, 1], [], []>} : vector<1x32xbf16>, vector<32x128xbf16>, vector<1x128xf32> -> vector<1x128xf32>
    %208 = arith.addf %205, %207 : vector<1x128xf32>
    %209 = arith.negf %208 : vector<1x128xf32>
    %210 = math.exp %209 : vector<1x128xf32>
    %cst_53 = arith.constant 1.000000e+00 : f32
    %211 = vector.broadcast %cst_53 : f32 to vector<1x128xf32>
    %212 = arith.addf %211, %210 : vector<1x128xf32>
    %213 = arith.divf %211, %212 : vector<1x128xf32>
    %214 = math.tanh %208 : vector<1x128xf32>
    %215 = vector.extract_strided_slice %213 {offsets = [0, 0], sizes = [1, 32], strides = [1, 1]} : vector<1x128xf32> to vector<1x32xf32>
    %216 = vector.extract_strided_slice %213 {offsets = [0, 32], sizes = [1, 32], strides = [1, 1]} : vector<1x128xf32> to vector<1x32xf32>
    %217 = vector.extract_strided_slice %214 {offsets = [0, 64], sizes = [1, 32], strides = [1, 1]} : vector<1x128xf32> to vector<1x32xf32>
    %218 = vector.extract_strided_slice %213 {offsets = [0, 96], sizes = [1, 32], strides = [1, 1]} : vector<1x128xf32> to vector<1x32xf32>
    %219 = arith.mulf %216, %199 : vector<1x32xf32>
    %220 = arith.mulf %215, %217 : vector<1x32xf32>
    %221 = arith.addf %219, %220 : vector<1x32xf32>
    %222 = math.tanh %221 : vector<1x32xf32>
    %223 = arith.mulf %218, %222 : vector<1x32xf32>
    %224 = arith.index_cast %c1_i32_50 : i32 to index
    %c0_54 = arith.constant 0 : index
    %225 = vector.load %arg10[%224, %c0_54] : memref<8x32xf32, #tpu.memory_space<vmem>>, vector<1x32xf32>
    tpu.vector_store %arg10[%224, %c0_54], %223 {strides = array<i32>} : memref<8x32xf32, #tpu.memory_space<vmem>>, vector<1x32xf32>,
    %c2_i32_55 = arith.constant 2 : i32
    %226 = arith.index_cast %c2_i32_55 : i32 to index
    %c0_56 = arith.constant 0 : index
    %227 = vector.load %arg11[%226, %c0_56] : memref<8x128xf32, #tpu.memory_space<vmem>>, vector<1x128xf32>
    %228 = arith.truncf %223 : vector<1x32xf32> to vector<1x32xbf16>
    %cst_57 = arith.constant dense<0.000000e+00> : vector<1x128xf32>
    %229 = tpu.matmul %228, %168, %cst_57 {dimension_numbers = #tpu.dot_dimension_numbers<[1], [0], [0], [1], [0, 0, 1, 1], [], []>} : vector<1x32xbf16>, vector<32x128xbf16>, vector<1x128xf32> -> vector<1x128xf32>
    %230 = arith.addf %227, %229 : vector<1x128xf32>
    %231 = arith.negf %230 : vector<1x128xf32>
    %232 = math.exp %231 : vector<1x128xf32>
    %cst_58 = arith.constant 1.000000e+00 : f32
    %233 = vector.broadcast %cst_58 : f32 to vector<1x128xf32>
    %234 = arith.addf %233, %232 : vector<1x128xf32>
    %235 = arith.divf %233, %234 : vector<1x128xf32>
    %236 = math.tanh %230 : vector<1x128xf32>
    %237 = vector.extract_strided_slice %235 {offsets = [0, 0], sizes = [1, 32], strides = [1, 1]} : vector<1x128xf32> to vector<1x32xf32>
    %238 = vector.extract_strided_slice %235 {offsets = [0, 32], sizes = [1, 32], strides = [1, 1]} : vector<1x128xf32> to vector<1x32xf32>
    %239 = vector.extract_strided_slice %236 {offsets = [0, 64], sizes = [1, 32], strides = [1, 1]} : vector<1x128xf32> to vector<1x32xf32>
    %240 = vector.extract_strided_slice %235 {offsets = [0, 96], sizes = [1, 32], strides = [1, 1]} : vector<1x128xf32> to vector<1x32xf32>
    %241 = arith.mulf %238, %221 : vector<1x32xf32>
    %242 = arith.mulf %237, %239 : vector<1x32xf32>
    %243 = arith.addf %241, %242 : vector<1x32xf32>
    %244 = math.tanh %243 : vector<1x32xf32>
    %245 = arith.mulf %240, %244 : vector<1x32xf32>
    %246 = arith.index_cast %c2_i32_55 : i32 to index
    %c0_59 = arith.constant 0 : index
    %247 = vector.load %arg10[%246, %c0_59] : memref<8x32xf32, #tpu.memory_space<vmem>>, vector<1x32xf32>
    tpu.vector_store %arg10[%246, %c0_59], %245 {strides = array<i32>} : memref<8x32xf32, #tpu.memory_space<vmem>>, vector<1x32xf32>,
    %c3_i32_60 = arith.constant 3 : i32
    %248 = arith.index_cast %c3_i32_60 : i32 to index
    %c0_61 = arith.constant 0 : index
    %249 = vector.load %arg11[%248, %c0_61] : memref<8x128xf32, #tpu.memory_space<vmem>>, vector<1x128xf32>
    %250 = arith.truncf %245 : vector<1x32xf32> to vector<1x32xbf16>
    %cst_62 = arith.constant dense<0.000000e+00> : vector<1x128xf32>
    %251 = tpu.matmul %250, %168, %cst_62 {dimension_numbers = #tpu.dot_dimension_numbers<[1], [0], [0], [1], [0, 0, 1, 1], [], []>} : vector<1x32xbf16>, vector<32x128xbf16>, vector<1x128xf32> -> vector<1x128xf32>
    %252 = arith.addf %249, %251 : vector<1x128xf32>
    %253 = arith.negf %252 : vector<1x128xf32>
    %254 = math.exp %253 : vector<1x128xf32>
    %cst_63 = arith.constant 1.000000e+00 : f32
    %255 = vector.broadcast %cst_63 : f32 to vector<1x128xf32>
    %256 = arith.addf %255, %254 : vector<1x128xf32>
    %257 = arith.divf %255, %256 : vector<1x128xf32>
    %258 = math.tanh %252 : vector<1x128xf32>
    %259 = vector.extract_strided_slice %257 {offsets = [0, 0], sizes = [1, 32], strides = [1, 1]} : vector<1x128xf32> to vector<1x32xf32>
    %260 = vector.extract_strided_slice %257 {offsets = [0, 32], sizes = [1, 32], strides = [1, 1]} : vector<1x128xf32> to vector<1x32xf32>
    %261 = vector.extract_strided_slice %258 {offsets = [0, 64], sizes = [1, 32], strides = [1, 1]} : vector<1x128xf32> to vector<1x32xf32>
    %262 = vector.extract_strided_slice %257 {offsets = [0, 96], sizes = [1, 32], strides = [1, 1]} : vector<1x128xf32> to vector<1x32xf32>
    %263 = arith.mulf %260, %243 : vector<1x32xf32>
    %264 = arith.mulf %259, %261 : vector<1x32xf32>
    %265 = arith.addf %263, %264 : vector<1x32xf32>
    %266 = math.tanh %265 : vector<1x32xf32>
    %267 = arith.mulf %262, %266 : vector<1x32xf32>
    %268 = arith.index_cast %c3_i32_60 : i32 to index
    %c0_64 = arith.constant 0 : index
    %269 = vector.load %arg10[%268, %c0_64] : memref<8x32xf32, #tpu.memory_space<vmem>>, vector<1x32xf32>
    tpu.vector_store %arg10[%268, %c0_64], %267 {strides = array<i32>} : memref<8x32xf32, #tpu.memory_space<vmem>>, vector<1x32xf32>,
    %c4_i32_65 = arith.constant 4 : i32
    %270 = arith.index_cast %c4_i32_65 : i32 to index
    %c0_66 = arith.constant 0 : index
    %271 = vector.load %arg11[%270, %c0_66] : memref<8x128xf32, #tpu.memory_space<vmem>>, vector<1x128xf32>
    %272 = arith.truncf %267 : vector<1x32xf32> to vector<1x32xbf16>
    %cst_67 = arith.constant dense<0.000000e+00> : vector<1x128xf32>
    %273 = tpu.matmul %272, %168, %cst_67 {dimension_numbers = #tpu.dot_dimension_numbers<[1], [0], [0], [1], [0, 0, 1, 1], [], []>} : vector<1x32xbf16>, vector<32x128xbf16>, vector<1x128xf32> -> vector<1x128xf32>
    %274 = arith.addf %271, %273 : vector<1x128xf32>
    %275 = arith.negf %274 : vector<1x128xf32>
    %276 = math.exp %275 : vector<1x128xf32>
    %cst_68 = arith.constant 1.000000e+00 : f32
    %277 = vector.broadcast %cst_68 : f32 to vector<1x128xf32>
    %278 = arith.addf %277, %276 : vector<1x128xf32>
    %279 = arith.divf %277, %278 : vector<1x128xf32>
    %280 = math.tanh %274 : vector<1x128xf32>
    %281 = vector.extract_strided_slice %279 {offsets = [0, 0], sizes = [1, 32], strides = [1, 1]} : vector<1x128xf32> to vector<1x32xf32>
    %282 = vector.extract_strided_slice %279 {offsets = [0, 32], sizes = [1, 32], strides = [1, 1]} : vector<1x128xf32> to vector<1x32xf32>
    %283 = vector.extract_strided_slice %280 {offsets = [0, 64], sizes = [1, 32], strides = [1, 1]} : vector<1x128xf32> to vector<1x32xf32>
    %284 = vector.extract_strided_slice %279 {offsets = [0, 96], sizes = [1, 32], strides = [1, 1]} : vector<1x128xf32> to vector<1x32xf32>
    %285 = arith.mulf %282, %265 : vector<1x32xf32>
    %286 = arith.mulf %281, %283 : vector<1x32xf32>
    %287 = arith.addf %285, %286 : vector<1x32xf32>
    %288 = math.tanh %287 : vector<1x32xf32>
    %289 = arith.mulf %284, %288 : vector<1x32xf32>
    %290 = arith.index_cast %c4_i32_65 : i32 to index
    %c0_69 = arith.constant 0 : index
    %291 = vector.load %arg10[%290, %c0_69] : memref<8x32xf32, #tpu.memory_space<vmem>>, vector<1x32xf32>
    tpu.vector_store %arg10[%290, %c0_69], %289 {strides = array<i32>} : memref<8x32xf32, #tpu.memory_space<vmem>>, vector<1x32xf32>,
    %c5_i32_70 = arith.constant 5 : i32
    %292 = arith.index_cast %c5_i32_70 : i32 to index
    %c0_71 = arith.constant 0 : index
    %293 = vector.load %arg11[%292, %c0_71] : memref<8x128xf32, #tpu.memory_space<vmem>>, vector<1x128xf32>
    %294 = arith.truncf %289 : vector<1x32xf32> to vector<1x32xbf16>
    %cst_72 = arith.constant dense<0.000000e+00> : vector<1x128xf32>
    %295 = tpu.matmul %294, %168, %cst_72 {dimension_numbers = #tpu.dot_dimension_numbers<[1], [0], [0], [1], [0, 0, 1, 1], [], []>} : vector<1x32xbf16>, vector<32x128xbf16>, vector<1x128xf32> -> vector<1x128xf32>
    %296 = arith.addf %293, %295 : vector<1x128xf32>
    %297 = arith.negf %296 : vector<1x128xf32>
    %298 = math.exp %297 : vector<1x128xf32>
    %cst_73 = arith.constant 1.000000e+00 : f32
    %299 = vector.broadcast %cst_73 : f32 to vector<1x128xf32>
    %300 = arith.addf %299, %298 : vector<1x128xf32>
    %301 = arith.divf %299, %300 : vector<1x128xf32>
    %302 = math.tanh %296 : vector<1x128xf32>
    %303 = vector.extract_strided_slice %301 {offsets = [0, 0], sizes = [1, 32], strides = [1, 1]} : vector<1x128xf32> to vector<1x32xf32>
    %304 = vector.extract_strided_slice %301 {offsets = [0, 32], sizes = [1, 32], strides = [1, 1]} : vector<1x128xf32> to vector<1x32xf32>
    %305 = vector.extract_strided_slice %302 {offsets = [0, 64], sizes = [1, 32], strides = [1, 1]} : vector<1x128xf32> to vector<1x32xf32>
    %306 = vector.extract_strided_slice %301 {offsets = [0, 96], sizes = [1, 32], strides = [1, 1]} : vector<1x128xf32> to vector<1x32xf32>
    %307 = arith.mulf %304, %287 : vector<1x32xf32>
    %308 = arith.mulf %303, %305 : vector<1x32xf32>
    %309 = arith.addf %307, %308 : vector<1x32xf32>
    %310 = math.tanh %309 : vector<1x32xf32>
    %311 = arith.mulf %306, %310 : vector<1x32xf32>
    %312 = arith.index_cast %c5_i32_70 : i32 to index
    %c0_74 = arith.constant 0 : index
    %313 = vector.load %arg10[%312, %c0_74] : memref<8x32xf32, #tpu.memory_space<vmem>>, vector<1x32xf32>
    tpu.vector_store %arg10[%312, %c0_74], %311 {strides = array<i32>} : memref<8x32xf32, #tpu.memory_space<vmem>>, vector<1x32xf32>,
    %c6_i32_75 = arith.constant 6 : i32
    %314 = arith.index_cast %c6_i32_75 : i32 to index
    %c0_76 = arith.constant 0 : index
    %315 = vector.load %arg11[%314, %c0_76] : memref<8x128xf32, #tpu.memory_space<vmem>>, vector<1x128xf32>
    %316 = arith.truncf %311 : vector<1x32xf32> to vector<1x32xbf16>
    %cst_77 = arith.constant dense<0.000000e+00> : vector<1x128xf32>
    %317 = tpu.matmul %316, %168, %cst_77 {dimension_numbers = #tpu.dot_dimension_numbers<[1], [0], [0], [1], [0, 0, 1, 1], [], []>} : vector<1x32xbf16>, vector<32x128xbf16>, vector<1x128xf32> -> vector<1x128xf32>
    %318 = arith.addf %315, %317 : vector<1x128xf32>
    %319 = arith.negf %318 : vector<1x128xf32>
    %320 = math.exp %319 : vector<1x128xf32>
    %cst_78 = arith.constant 1.000000e+00 : f32
    %321 = vector.broadcast %cst_78 : f32 to vector<1x128xf32>
    %322 = arith.addf %321, %320 : vector<1x128xf32>
    %323 = arith.divf %321, %322 : vector<1x128xf32>
    %324 = math.tanh %318 : vector<1x128xf32>
    %325 = vector.extract_strided_slice %323 {offsets = [0, 0], sizes = [1, 32], strides = [1, 1]} : vector<1x128xf32> to vector<1x32xf32>
    %326 = vector.extract_strided_slice %323 {offsets = [0, 32], sizes = [1, 32], strides = [1, 1]} : vector<1x128xf32> to vector<1x32xf32>
    %327 = vector.extract_strided_slice %324 {offsets = [0, 64], sizes = [1, 32], strides = [1, 1]} : vector<1x128xf32> to vector<1x32xf32>
    %328 = vector.extract_strided_slice %323 {offsets = [0, 96], sizes = [1, 32], strides = [1, 1]} : vector<1x128xf32> to vector<1x32xf32>
    %329 = arith.mulf %326, %309 : vector<1x32xf32>
    %330 = arith.mulf %325, %327 : vector<1x32xf32>
    %331 = arith.addf %329, %330 : vector<1x32xf32>
    %332 = math.tanh %331 : vector<1x32xf32>
    %333 = arith.mulf %328, %332 : vector<1x32xf32>
    %334 = arith.index_cast %c6_i32_75 : i32 to index
    %c0_79 = arith.constant 0 : index
    %335 = vector.load %arg10[%334, %c0_79] : memref<8x32xf32, #tpu.memory_space<vmem>>, vector<1x32xf32>
    tpu.vector_store %arg10[%334, %c0_79], %333 {strides = array<i32>} : memref<8x32xf32, #tpu.memory_space<vmem>>, vector<1x32xf32>,
    %c7_i32_80 = arith.constant 7 : i32
    %336 = arith.index_cast %c7_i32_80 : i32 to index
    %c0_81 = arith.constant 0 : index
    %337 = vector.load %arg11[%336, %c0_81] : memref<8x128xf32, #tpu.memory_space<vmem>>, vector<1x128xf32>
    %338 = arith.truncf %333 : vector<1x32xf32> to vector<1x32xbf16>
    %cst_82 = arith.constant dense<0.000000e+00> : vector<1x128xf32>
    %339 = tpu.matmul %338, %168, %cst_82 {dimension_numbers = #tpu.dot_dimension_numbers<[1], [0], [0], [1], [0, 0, 1, 1], [], []>} : vector<1x32xbf16>, vector<32x128xbf16>, vector<1x128xf32> -> vector<1x128xf32>
    %340 = arith.addf %337, %339 : vector<1x128xf32>
    %341 = arith.negf %340 : vector<1x128xf32>
    %342 = math.exp %341 : vector<1x128xf32>
    %cst_83 = arith.constant 1.000000e+00 : f32
    %343 = vector.broadcast %cst_83 : f32 to vector<1x128xf32>
    %344 = arith.addf %343, %342 : vector<1x128xf32>
    %345 = arith.divf %343, %344 : vector<1x128xf32>
    %346 = math.tanh %340 : vector<1x128xf32>
    %347 = vector.extract_strided_slice %345 {offsets = [0, 0], sizes = [1, 32], strides = [1, 1]} : vector<1x128xf32> to vector<1x32xf32>
    %348 = vector.extract_strided_slice %345 {offsets = [0, 32], sizes = [1, 32], strides = [1, 1]} : vector<1x128xf32> to vector<1x32xf32>
    %349 = vector.extract_strided_slice %346 {offsets = [0, 64], sizes = [1, 32], strides = [1, 1]} : vector<1x128xf32> to vector<1x32xf32>
    %350 = vector.extract_strided_slice %345 {offsets = [0, 96], sizes = [1, 32], strides = [1, 1]} : vector<1x128xf32> to vector<1x32xf32>
    %351 = arith.mulf %348, %331 : vector<1x32xf32>
    %352 = arith.mulf %347, %349 : vector<1x32xf32>
    %353 = arith.addf %351, %352 : vector<1x32xf32>
    %354 = math.tanh %353 : vector<1x32xf32>
    %355 = arith.mulf %350, %354 : vector<1x32xf32>
    %356 = arith.index_cast %c7_i32_80 : i32 to index
    %c0_84 = arith.constant 0 : index
    %357 = vector.load %arg10[%356, %c0_84] : memref<8x32xf32, #tpu.memory_space<vmem>>, vector<1x32xf32>
    tpu.vector_store %arg10[%356, %c0_84], %355 {strides = array<i32>} : memref<8x32xf32, #tpu.memory_space<vmem>>, vector<1x32xf32>,
    %c8_i32_85 = arith.constant 8 : i32
    %c0_86 = arith.constant 0 : index
    %c0_87 = arith.constant 0 : index
    %358 = vector.load %arg10[%c0_86, %c0_87] : memref<8x32xf32, #tpu.memory_space<vmem>>, vector<8x32xf32>
    %359 = arith.truncf %358 : vector<8x32xf32> to vector<8x32xbf16>
    %c0_88 = arith.constant 0 : index
    %c0_89 = arith.constant 0 : index
    %360 = vector.load %arg7[%c0_88, %c0_89] : memref<32x128xbf16, #tpu.memory_space<vmem>>, vector<32x128xbf16>
    %cst_90 = arith.constant dense<0.000000e+00> : vector<8x128xf32>
    %361 = tpu.matmul %359, %360, %cst_90 {dimension_numbers = #tpu.dot_dimension_numbers<[1], [0], [0], [1], [0, 0, 1, 1], [], []>} : vector<8x32xbf16>, vector<32x128xbf16>, vector<8x128xf32> -> vector<8x128xf32>
    %c0_91 = arith.constant 0 : index
    %c0_92 = arith.constant 0 : index
    %362 = vector.load %arg8[%c0_91, %c0_92] : memref<8x128xf32, #tpu.memory_space<vmem>>, vector<8x128xf32>
    tpu.vector_store %arg8[%c0_91, %c0_92], %361 {strides = array<i32>} : memref<8x128xf32, #tpu.memory_space<vmem>>, vector<8x128xf32>,
    return
  }
}

</mosaic_0001>

<llo_original>
// kernel: tpu_custom_call.1
$region0: #{tpu_custom_call.1}
  #allocation0 [shape = 'u32[]', space=smem, size = 0x4, offset = 0x4, fixed_abs, tag = 'smem constant byte address 0x4 - core index']
  #allocation1 [shape = 'u32[144,128]{1,0:T(1,128)}', space=vmem, size = 0x12000, scoped, tag = 'internal scratch']
  #allocation2 [shape = 'f32[8,32]{1,0:T(8,128)}', space=vmem, size = 0x1000, scoped, tag = 'scratch operand']
  #allocation3 [shape = 'f32[8,32]{1,0:T(8,128)}', space=vmem, size = 0x1000, scoped, tag = 'scratch operand']
  #allocation4 [shape = 'f32[8,128]{1,0:T(8,128)}', space=vmem, size = 0x1000, scoped, tag = 'scratch operand']
  %s0 = inlined_call_operand.hbm [shape: bf16[1,16], index: 0, kind: input, shape index: {}]
  %s1 = inlined_call_operand.hbm [shape: bf16[16,128], index: 1, kind: input, shape index: {}]
  %s2 = inlined_call_operand.hbm [shape: bf16[32,128], index: 2, kind: input, shape index: {}]
  %s3 = inlined_call_operand.vmem [shape: f32[1,128], index: 3, kind: input, shape index: {}]
  %s4 = inlined_call_operand.hbm [shape: bf16[32,128], index: 4, kind: input, shape index: {}]
  %s5 = inlined_call_operand.vmem [shape: bf16[32,128], index: 5, kind: input, shape index: {}]
  %s6 = inlined_call_operand.vmem [shape: f32[1,128], index: 6, kind: input, shape index: {}]
  %s7 = inlined_call_operand.hbm [shape: bf16[32,128], index: 7, kind: input, shape index: {}]
  %s8 = inlined_call_operand.hbm [shape: f32[8,128], index: 8, kind: output, shape index: {}]
  %s9 = sld [smem:[#allocation0]]
  $region62: #{tpu_custom_call.1} parent=0
    _
  %s11 = ssub.s32 1, %s9
  %s12 = scalar_select 0, %s11, %s9
  $region1: #{tpu_custom_call.1} parent=0
    #allocation5 [shape = 'u8[512]{0}', space=vmem, size = 0x400, scoped, tag = 'input window, operand 0, single buffered']
    #allocation6 [shape = 's32[1]{0}', space=sflag, size = 0x4, scoped, tag = 'scoped memory for tpu_custom_call.1']
    #allocation7 [shape = 's32[1]{0}', space=sflag, size = 0x4, scoped, tag = 'scoped memory for tpu_custom_call.1']
    #allocation8 [shape = 'u8[4096]{0}', space=vmem, size = 0x1000, scoped, tag = 'input window, operand 1, single buffered']
    #allocation9 [shape = 's32[1]{0}', space=sflag, size = 0x4, scoped, tag = 'scoped memory for tpu_custom_call.1']
    #allocation10 [shape = 'u8[8192]{0}', space=vmem, size = 0x2000, scoped, tag = 'input window, operand 2, single buffered']
    #allocation11 [shape = 'u8[8192]{0}', space=vmem, size = 0x2000, scoped, tag = 'input window, operand 4, single buffered']
    #allocation12 [shape = 's32[1]{0}', space=sflag, size = 0x4, scoped, tag = 'scoped memory for tpu_custom_call.1']
    #allocation13 [shape = 'u8[8192]{0}', space=vmem, size = 0x2000, scoped, tag = 'input window, operand 7, single buffered']
    #allocation14 [shape = 'u8[4096]{0}', space=vmem, size = 0x1000, scoped, tag = 'output window, operand 0, single buffered']
    %13 = vsyncpa [#allocation6], 0
    %14 = vsyncpa [#allocation9], 0
    %15 = vsyncpa [#allocation12], 0
    %16 = vsyncpa [#allocation7], 0
    // Predicated region
    $region2: #{tpu_custom_call.1} parent=1 // pred_check
      _
    $region3: #{tpu_custom_call.1} parent=1 // pred_check_branch
      %18 = sbr.rel (0) target = $region5
    $region4: #{tpu_custom_call.1} parent=1 // pred_region
      %s20 = ssub.s32 16, 16
      %21 = vsyncadd [#allocation6], %s20
      %s23 = sshll.u32 [#allocation5], 4
      %s24 = int_to_ptr.vmem [resolvable:$true] %s23
      %26 = dma.hbm_to_vmem [thread:$0]  %s0, 16, %s24, [#allocation6]
    $region5: #{tpu_custom_call.1} parent=1 // pred_fallthru
      _
    // Predicated region
    $region6: #{tpu_custom_call.1} parent=1 // pred_check
      _
    $region7: #{tpu_custom_call.1} parent=1 // pred_check_branch
      %28 = sbr.rel (0) target = $region9
    $region8: #{tpu_custom_call.1} parent=1 // pred_region
      %s30 = ssub.s32 128, 128
      %31 = vsyncadd [#allocation9], %s30
      %s32 = sshll.u32 [#allocation8], 4
      %s33 = int_to_ptr.vmem [resolvable:$true] %s32
      %38 = dma.hbm_to_vmem [thread:$0]  %s1, 128, %s33, [#allocation9], 64, 64, 4
    $region9: #{tpu_custom_call.1} parent=1 // pred_fallthru
      _
    // Predicated region
    $region10: #{tpu_custom_call.1} parent=1 // pred_check
      _
    $region11: #{tpu_custom_call.1} parent=1 // pred_check_branch
      %40 = sbr.rel (0) target = $region13
    $region12: #{tpu_custom_call.1} parent=1 // pred_region
      %s42 = ssub.s32 256, 256
      %43 = vsyncadd [#allocation9], %s42
      %s44 = sshll.u32 [#allocation10], 4
      %s45 = int_to_ptr.vmem [resolvable:$true] %s44
      %50 = dma.hbm_to_vmem [thread:$0]  %s2, 256, %s45, [#allocation9], 64, 64, 4
    $region13: #{tpu_custom_call.1} parent=1 // pred_fallthru
      _
    // Predicated region
    $region14: #{tpu_custom_call.1} parent=1 // pred_check
      _
    $region15: #{tpu_custom_call.1} parent=1 // pred_check_branch
      %52 = sbr.rel (0) target = $region17
    $region16: #{tpu_custom_call.1} parent=1 // pred_region
      _
    $region17: #{tpu_custom_call.1} parent=1 // pred_fallthru
      _
    // Predicated region
    $region18: #{tpu_custom_call.1} parent=1 // pred_check
      _
    $region19: #{tpu_custom_call.1} parent=1 // pred_check_branch
      %54 = sbr.rel (0) target = $region21
    $region20: #{tpu_custom_call.1} parent=1 // pred_region
      %s56 = ssub.s32 256, 256
      %57 = vsyncadd [#allocation12], %s56
      %s58 = sshll.u32 [#allocation11], 4
      %s59 = int_to_ptr.vmem [resolvable:$true] %s58
      %64 = dma.hbm_to_vmem [thread:$0]  %s4, 256, %s59, [#allocation12], 64, 64, 4
    $region21: #{tpu_custom_call.1} parent=1 // pred_fallthru
      _
    // Predicated region
    $region22: #{tpu_custom_call.1} parent=1 // pred_check
      _
    $region23: #{tpu_custom_call.1} parent=1 // pred_check_branch
      %66 = sbr.rel (0) target = $region25
    $region24: #{tpu_custom_call.1} parent=1 // pred_region
      _
    $region25: #{tpu_custom_call.1} parent=1 // pred_fallthru
      _
    // Predicated region
    $region26: #{tpu_custom_call.1} parent=1 // pred_check
      _
    $region27: #{tpu_custom_call.1} parent=1 // pred_check_branch
      %68 = sbr.rel (0) target = $region29
    $region28: #{tpu_custom_call.1} parent=1 // pred_region
      _
    $region29: #{tpu_custom_call.1} parent=1 // pred_fallthru
      _
    // Predicated region
    $region30: #{tpu_custom_call.1} parent=1 // pred_check
      _
    $region31: #{tpu_custom_call.1} parent=1 // pred_check_branch
      %70 = sbr.rel (0) target = $region33
    $region32: #{tpu_custom_call.1} parent=1 // pred_region
      %s72 = ssub.s32 256, 256
      %73 = vsyncadd [#allocation12], %s72
      %s74 = sshll.u32 [#allocation13], 4
      %s75 = int_to_ptr.vmem [resolvable:$true] %s74
      %80 = dma.hbm_to_vmem [thread:$0]  %s7, 256, %s75, [#allocation12], 64, 64, 4
    $region33: #{tpu_custom_call.1} parent=1 // pred_fallthru
      _
    // Predicated region
    $region34: #{tpu_custom_call.1} parent=1 // pred_check
      _
    $region35: #{tpu_custom_call.1} parent=1 // pred_check_branch
      %82 = sbr.rel (0) target = $region37
    $region36: #{tpu_custom_call.1} parent=1 // pred_region
      %83 = dma.done [#allocation6], 16
    $region37: #{tpu_custom_call.1} parent=1 // pred_fallthru
      _
    // Predicated region
    $region38: #{tpu_custom_call.1} parent=1 // pred_check
      _
    $region39: #{tpu_custom_call.1} parent=1 // pred_check_branch
      %85 = sbr.rel (0) target = $region41
    $region40: #{tpu_custom_call.1} parent=1 // pred_region
      %86 = dma.done [#allocation9], 128
    $region41: #{tpu_custom_call.1} parent=1 // pred_fallthru
      _
    // Predicated region
    $region42: #{tpu_custom_call.1} parent=1 // pred_check
      _
    $region43: #{tpu_custom_call.1} parent=1 // pred_check_branch
      %88 = sbr.rel (0) target = $region45
    $region44: #{tpu_custom_call.1} parent=1 // pred_region
      %89 = dma.done [#allocation9], 256
    $region45: #{tpu_custom_call.1} parent=1 // pred_fallthru
      _
    // Predicated region
    $region46: #{tpu_custom_call.1} parent=1 // pred_check
      _
    $region47: #{tpu_custom_call.1} parent=1 // pred_check_branch
      %91 = sbr.rel (0) target = $region49
    $region48: #{tpu_custom_call.1} parent=1 // pred_region
      %92 = dma.done [#allocation12], 256
    $region49: #{tpu_custom_call.1} parent=1 // pred_fallthru
      _
    // Predicated region
    $region50: #{tpu_custom_call.1} parent=1 // pred_check
      _
    $region51: #{tpu_custom_call.1} parent=1 // pred_check_branch
      %94 = sbr.rel (0) target = $region53
    $region52: #{tpu_custom_call.1} parent=1 // pred_region
      %95 = dma.done [#allocation12], 256
    $region53: #{tpu_custom_call.1} parent=1 // pred_fallthru
      _
    %v97 = vld [vmem:[#allocation8] sm:$0xf]
    %v98 = vld [vmem:[#allocation8 + $0x4] sm:$0xf]
    %v99 = vld [vmem:[#allocation10] sm:$0xf]
    %v100 = vld [vmem:[#allocation10 + $0x4] sm:$0xf]
    %v101 = vld [vmem:[#allocation10 + $0x8] sm:$0xf]
    %v102 = vld [vmem:[#allocation10 + $0xc] sm:$0xf]
    %v103 = vld [vmem:[%s3] sm:$0x1]
    %v104 = vld [vmem:[#allocation5] sm:$0x1]
    %v107 = vunpack.c.l.b16 %v97
    %v108 = vunpack.c.l.b16 %v98
    %v109 = vpack.c.b16 %v108, %v107
    %vm111 = vcmask 130048
    %v113 = vsel %vm111, %v104, 0
    %115 = vmatprep.subr.bf16.mxu0 0
    %116 = vmatpush1.bf16.msra.mxu0 %v109
    %117 = vmatprep.subr.bf16.mxu0 0
    %118 = vmatpush1.bf16.msra.mxu0 0
    %119 = vmatprep.subr.bf16.mxu0 0
    %120 = vmatpush1.bf16.msra.mxu0 0
    %121 = vmatprep.subr.bf16.mxu0 0
    %122 = vmatpush1.bf16.msra.mxu0 0
    %123 = vmatprep.subr.bf16.mxu0 0
    %124 = vmatpush1.bf16.msra.mxu0 0
    %125 = vmatprep.subr.bf16.mxu0 0
    %126 = vmatpush1.bf16.msra.mxu0 0
    %127 = vmatprep.subr.bf16.mxu0 0
    %128 = vmatpush1.bf16.msra.mxu0 0
    %129 = vmatprep.subr.bf16.mxu0 0
    %130 = vmatpush1.bf16.msra.mxu0 0
    %131 = vmatprep.subr.bf16.mxu0 0
    %132 = vmatpush1.bf16.msra.mxu0 0
    %133 = vmatprep.subr.bf16.mxu0 0
    %134 = vmatpush1.bf16.msra.mxu0 0
    %135 = vmatprep.subr.bf16.mxu0 0
    %136 = vmatpush1.bf16.msra.mxu0 0
    %137 = vmatprep.subr.bf16.mxu0 0
    %138 = vmatpush1.bf16.msra.mxu0 0
    %139 = vmatprep.subr.bf16.mxu0 0
    %140 = vmatpush1.bf16.msra.mxu0 0
    %141 = vmatprep.subr.bf16.mxu0 0
    %142 = vmatpush1.bf16.msra.mxu0 0
    %143 = vmatprep.subr.bf16.mxu0 0
    %144 = vmatpush1.bf16.msra.mxu0 0
    %145 = vmatprep.subr.bf16.mxu0 0
    %146 = vmatpush1.bf16.msra.mxu0 0
    %147 = vmatprep.mubr.bf16.mxu0 0
    %148 = vmatmul.mubr.bf16.gmra.mrb[0].mxu0 %v113
    %v149 = vpop.f32.mrb[0].mxu0
    %v150 = vadd.f32 %v103, %v149
    %v151 = vpop.f32.mrb[0].mxu0
    %v152 = vpop.f32.mrb[0].mxu0
    %v153 = vpop.f32.mrb[0].mxu0
    %154 = vdwg.mxu0
    %v159 = vunpack.c.l.b16 %v99
    %v160 = vunpack.c.l.b16 %v100
    %v161 = vunpack.c.l.b16 %v101
    %v162 = vunpack.c.l.b16 %v102
    %v163 = vpack.c.b16 %v160, %v159
    %v164 = vpack.c.b16 %v162, %v161
    %vm167 = vcmask 261120
    %v169 = vsel %vm167, 0, 0
    %171 = vmatprep.subr.bf16.mxu0 0
    %172 = vmatpush1.bf16.msra.mxu0 %v163
    %173 = vmatprep.subr.bf16.mxu0 0
    %174 = vmatpush1.bf16.msra.mxu0 %v164
    %175 = vmatprep.subr.bf16.mxu0 0
    %176 = vmatpush1.bf16.msra.mxu0 0
    %177 = vmatprep.subr.bf16.mxu0 0
    %178 = vmatpush1.bf16.msra.mxu0 0
    %179 = vmatprep.subr.bf16.mxu0 0
    %180 = vmatpush1.bf16.msra.mxu0 0
    %181 = vmatprep.subr.bf16.mxu0 0
    %182 = vmatpush1.bf16.msra.mxu0 0
    %183 = vmatprep.subr.bf16.mxu0 0
    %184 = vmatpush1.bf16.msra.mxu0 0
    %185 = vmatprep.subr.bf16.mxu0 0
    %186 = vmatpush1.bf16.msra.mxu0 0
    %187 = vmatprep.subr.bf16.mxu0 0
    %188 = vmatpush1.bf16.msra.mxu0 0
    %189 = vmatprep.subr.bf16.mxu0 0
    %190 = vmatpush1.bf16.msra.mxu0 0
    %191 = vmatprep.subr.bf16.mxu0 0
    %192 = vmatpush1.bf16.msra.mxu0 0
    %193 = vmatprep.subr.bf16.mxu0 0
    %194 = vmatpush1.bf16.msra.mxu0 0
    %195 = vmatprep.subr.bf16.mxu0 0
    %196 = vmatpush1.bf16.msra.mxu0 0
    %197 = vmatprep.subr.bf16.mxu0 0
    %198 = vmatpush1.bf16.msra.mxu0 0
    %199 = vmatprep.subr.bf16.mxu0 0
    %200 = vmatpush1.bf16.msra.mxu0 0
    %201 = vmatprep.subr.bf16.mxu0 0
    %202 = vmatpush1.bf16.msra.mxu0 0
    %203 = vmatprep.mubr.bf16.mxu0 0
    %204 = vmatmul.mubr.bf16.gmra.mrb[0].mxu0 %v169
    %v205 = vpop.f32.mrb[0].mxu0
    %v206 = vadd.f32 0.0, %v205
    %v207 = vpop.f32.mrb[0].mxu0
    %v208 = vpop.f32.mrb[0].mxu0
    %v209 = vpop.f32.mrb[0].mxu0
    %210 = vdwg.mxu0
    %v211 = vadd.f32 %v150, %v206
    %v212 = vxor.u32 %v211, 2147483648
    %v213 = vmul.f32 %v212, 1.442695
    %v214 = vpow.pop %v213
    %v215 = vadd.f32 %v214, 1.0
    %v216 = vrcp.pop %v215
    %v217 = vmul.f32 1.0, %v216
    %v218 = vtanh.pop %v211
    %v219 = vmul.f32 %v217, 0.0
    %221 = vrot.lane.b32.xlu0 %v218, 64
    %v222 = vpop.permute.xlu0 %221
    %v224 = vmul.f32 %v217, %v222
    %226 = vrot.lane.b32.xlu0 %v224, 32
    %v227 = vpop.permute.xlu0 %226
    %v229 = vadd.f32 %v219, %v227
    %v230 = vtanh.pop %v229
    %232 = vrot.lane.b32.xlu0 %v230, 64
    %v233 = vpop.permute.xlu0 %232
    %v235 = vmul.f32 %v217, %v233
    %237 = vrot.lane.b32.xlu0 %v235, 32
    %v238 = vpop.permute.xlu0 %237
    %vm240 = vcmask 253952
    %241 = vst.msk [vmem:[#allocation2] sm:$0x1] %vm240, %v238
    %v242 = vpack.c.bf16 %v235, %v235
    %244 = vrot.lane.b32.xlu0 %v242, 32
    %v245 = vpop.permute.xlu0 %244
    %v247 = vsel %vm167, %v245, 0
    %249 = vmatprep.subr.bf16.mxu0 0
    %250 = vmatpush1.bf16.msra.mxu0 %v163
    %251 = vmatprep.subr.bf16.mxu0 0
    %252 = vmatpush1.bf16.msra.mxu0 %v164
    %253 = vmatprep.subr.bf16.mxu0 0
    %254 = vmatpush1.bf16.msra.mxu0 0
    %255 = vmatprep.subr.bf16.mxu0 0
    %256 = vmatpush1.bf16.msra.mxu0 0
    %257 = vmatprep.subr.bf16.mxu0 0
    %258 = vmatpush1.bf16.msra.mxu0 0
    %259 = vmatprep.subr.bf16.mxu0 0
    %260 = vmatpush1.bf16.msra.mxu0 0
    %261 = vmatprep.subr.bf16.mxu0 0
    %262 = vmatpush1.bf16.msra.mxu0 0
    %263 = vmatprep.subr.bf16.mxu0 0
    %264 = vmatpush1.bf16.msra.mxu0 0
    %265 = vmatprep.subr.bf16.mxu0 0
    %266 = vmatpush1.bf16.msra.mxu0 0
    %267 = vmatprep.subr.bf16.mxu0 0
    %268 = vmatpush1.bf16.msra.mxu0 0
    %269 = vmatprep.subr.bf16.mxu0 0
    %270 = vmatpush1.bf16.msra.mxu0 0
    %271 = vmatprep.subr.bf16.mxu0 0
    %272 = vmatpush1.bf16.msra.mxu0 0
    %273 = vmatprep.subr.bf16.mxu0 0
    %274 = vmatpush1.bf16.msra.mxu0 0
    %275 = vmatprep.subr.bf16.mxu0 0
    %276 = vmatpush1.bf16.msra.mxu0 0
    %277 = vmatprep.subr.bf16.mxu0 0
    %278 = vmatpush1.bf16.msra.mxu0 0
    %279 = vmatprep.subr.bf16.mxu0 0
    %280 = vmatpush1.bf16.msra.mxu0 0
    %281 = vmatprep.mubr.bf16.mxu0 0
    %282 = vmatmul.mubr.bf16.gmra.mrb[0].mxu0 %v247
    %v283 = vpop.f32.mrb[0].mxu0
    %v284 = vadd.f32 0.0, %v283
    %v285 = vpop.f32.mrb[0].mxu0
    %v286 = vpop.f32.mrb[0].mxu0
    %v287 = vpop.f32.mrb[0].mxu0
    %288 = vdwg.mxu0
    %v289 = vadd.f32 %v150, %v284
    %v290 = vxor.u32 %v289, 2147483648
    %v291 = vmul.f32 %v290, 1.442695
    %v292 = vpow.pop %v291
    %v293 = vadd.f32 %v292, 1.0
    %v294 = vrcp.pop %v293
    %v295 = vmul.f32 1.0, %v294
    %v296 = vtanh.pop %v289
    %v297 = vmul.f32 %v295, %v229
    %299 = vrot.lane.b32.xlu0 %v296, 64
    %v300 = vpop.permute.xlu0 %299
    %v302 = vmul.f32 %v295, %v300
    %304 = vrot.lane.b32.xlu0 %v302, 32
    %v305 = vpop.permute.xlu0 %304
    %v307 = vadd.f32 %v297, %v305
    %v308 = vtanh.pop %v307
    %310 = vrot.lane.b32.xlu0 %v308, 64
    %v311 = vpop.permute.xlu0 %310
    %v313 = vmul.f32 %v295, %v311
    %315 = vrot.lane.b32.xlu0 %v313, 32
    %v316 = vpop.permute.xlu0 %315
    %318 = vst.msk [vmem:[#allocation2 + $0x1] sm:$0x1] %vm240, %v316
    %v319 = vpack.c.bf16 %v313, %v313
    %321 = vrot.lane.b32.xlu0 %v319, 32
    %v322 = vpop.permute.xlu0 %321
    %v324 = vsel %vm167, %v322, 0
    %326 = vmatprep.subr.bf16.mxu0 0
    %327 = vmatpush1.bf16.msra.mxu0 %v163
    %328 = vmatprep.subr.bf16.mxu0 0
    %329 = vmatpush1.bf16.msra.mxu0 %v164
    %330 = vmatprep.subr.bf16.mxu0 0
    %331 = vmatpush1.bf16.msra.mxu0 0
    %332 = vmatprep.subr.bf16.mxu0 0
    %333 = vmatpush1.bf16.msra.mxu0 0
    %334 = vmatprep.subr.bf16.mxu0 0
    %335 = vmatpush1.bf16.msra.mxu0 0
    %336 = vmatprep.subr.bf16.mxu0 0
    %337 = vmatpush1.bf16.msra.mxu0 0
    %338 = vmatprep.subr.bf16.mxu0 0
    %339 = vmatpush1.bf16.msra.mxu0 0
    %340 = vmatprep.subr.bf16.mxu0 0
    %341 = vmatpush1.bf16.msra.mxu0 0
    %342 = vmatprep.subr.bf16.mxu0 0
    %343 = vmatpush1.bf16.msra.mxu0 0
    %344 = vmatprep.subr.bf16.mxu0 0
    %345 = vmatpush1.bf16.msra.mxu0 0
    %346 = vmatprep.subr.bf16.mxu0 0
    %347 = vmatpush1.bf16.msra.mxu0 0
    %348 = vmatprep.subr.bf16.mxu0 0
    %349 = vmatpush1.bf16.msra.mxu0 0
    %350 = vmatprep.subr.bf16.mxu0 0
    %351 = vmatpush1.bf16.msra.mxu0 0
    %352 = vmatprep.subr.bf16.mxu0 0
    %353 = vmatpush1.bf16.msra.mxu0 0
    %354 = vmatprep.subr.bf16.mxu0 0
    %355 = vmatpush1.bf16.msra.mxu0 0
    %356 = vmatprep.subr.bf16.mxu0 0
    %357 = vmatpush1.bf16.msra.mxu0 0
    %358 = vmatprep.mubr.bf16.mxu0 0
    %359 = vmatmul.mubr.bf16.gmra.mrb[0].mxu0 %v324
    %v360 = vpop.f32.mrb[0].mxu0
    %v361 = vadd.f32 0.0, %v360
    %v362 = vpop.f32.mrb[0].mxu0
    %v363 = vpop.f32.mrb[0].mxu0
    %v364 = vpop.f32.mrb[0].mxu0
    %365 = vdwg.mxu0
    %v366 = vadd.f32 %v150, %v361
    %v367 = vxor.u32 %v366, 2147483648
    %v368 = vmul.f32 %v367, 1.442695
    %v369 = vpow.pop %v368
    %v370 = vadd.f32 %v369, 1.0
    %v371 = vrcp.pop %v370
    %v372 = vmul.f32 1.0, %v371
    %v373 = vtanh.pop %v366
    %v374 = vmul.f32 %v372, %v307
    %376 = vrot.lane.b32.xlu0 %v373, 64
    %v377 = vpop.permute.xlu0 %376
    %v379 = vmul.f32 %v372, %v377
    %381 = vrot.lane.b32.xlu0 %v379, 32
    %v382 = vpop.permute.xlu0 %381
    %v384 = vadd.f32 %v374, %v382
    %v385 = vtanh.pop %v384
    %387 = vrot.lane.b32.xlu0 %v385, 64
    %v388 = vpop.permute.xlu0 %387
    %v390 = vmul.f32 %v372, %v388
    %392 = vrot.lane.b32.xlu0 %v390, 32
    %v393 = vpop.permute.xlu0 %392
    %395 = vst.msk [vmem:[#allocation2 + $0x2] sm:$0x1] %vm240, %v393
    %v396 = vpack.c.bf16 %v390, %v390
    %398 = vrot.lane.b32.xlu0 %v396, 32
    %v399 = vpop.permute.xlu0 %398
    %v401 = vsel %vm167, %v399, 0
    %403 = vmatprep.subr.bf16.mxu0 0
    %404 = vmatpush1.bf16.msra.mxu0 %v163
    %405 = vmatprep.subr.bf16.mxu0 0
    %406 = vmatpush1.bf16.msra.mxu0 %v164
    %407 = vmatprep.subr.bf16.mxu0 0
    %408 = vmatpush1.bf16.msra.mxu0 0
    %409 = vmatprep.subr.bf16.mxu0 0
    %410 = vmatpush1.bf16.msra.mxu0 0
    %411 = vmatprep.subr.bf16.mxu0 0
    %412 = vmatpush1.bf16.msra.mxu0 0
    %413 = vmatprep.subr.bf16.mxu0 0
    %414 = vmatpush1.bf16.msra.mxu0 0
    %415 = vmatprep.subr.bf16.mxu0 0
    %416 = vmatpush1.bf16.msra.mxu0 0
    %417 = vmatprep.subr.bf16.mxu0 0
    %418 = vmatpush1.bf16.msra.mxu0 0
    %419 = vmatprep.subr.bf16.mxu0 0
    %420 = vmatpush1.bf16.msra.mxu0 0
    %421 = vmatprep.subr.bf16.mxu0 0
    %422 = vmatpush1.bf16.msra.mxu0 0
    %423 = vmatprep.subr.bf16.mxu0 0
    %424 = vmatpush1.bf16.msra.mxu0 0
    %425 = vmatprep.subr.bf16.mxu0 0
    %426 = vmatpush1.bf16.msra.mxu0 0
    %427 = vmatprep.subr.bf16.mxu0 0
    %428 = vmatpush1.bf16.msra.mxu0 0
    %429 = vmatprep.subr.bf16.mxu0 0
    %430 = vmatpush1.bf16.msra.mxu0 0
    %431 = vmatprep.subr.bf16.mxu0 0
    %432 = vmatpush1.bf16.msra.mxu0 0
    %433 = vmatprep.subr.bf16.mxu0 0
    %434 = vmatpush1.bf16.msra.mxu0 0
    %435 = vmatprep.mubr.bf16.mxu0 0
    %436 = vmatmul.mubr.bf16.gmra.mrb[0].mxu0 %v401
    %v437 = vpop.f32.mrb[0].mxu0
    %v438 = vadd.f32 0.0, %v437
    %v439 = vpop.f32.mrb[0].mxu0
    %v440 = vpop.f32.mrb[0].mxu0
    %v441 = vpop.f32.mrb[0].mxu0
    %442 = vdwg.mxu0
    %v443 = vadd.f32 %v150, %v438
    %v444 = vxor.u32 %v443, 2147483648
    %v445 = vmul.f32 %v444, 1.442695
    %v446 = vpow.pop %v445
    %v447 = vadd.f32 %v446, 1.0
    %v448 = vrcp.pop %v447
    %v449 = vmul.f32 1.0, %v448
    %v450 = vtanh.pop %v443
    %v451 = vmul.f32 %v449, %v384
    %453 = vrot.lane.b32.xlu0 %v450, 64
    %v454 = vpop.permute.xlu0 %453
    %v456 = vmul.f32 %v449, %v454
    %458 = vrot.lane.b32.xlu0 %v456, 32
    %v459 = vpop.permute.xlu0 %458
    %v461 = vadd.f32 %v451, %v459
    %v462 = vtanh.pop %v461
    %464 = vrot.lane.b32.xlu0 %v462, 64
    %v465 = vpop.permute.xlu0 %464
    %v467 = vmul.f32 %v449, %v465
    %469 = vrot.lane.b32.xlu0 %v467, 32
    %v470 = vpop.permute.xlu0 %469
    %472 = vst.msk [vmem:[#allocation2 + $0x3] sm:$0x1] %vm240, %v470
    %v473 = vpack.c.bf16 %v467, %v467
    %475 = vrot.lane.b32.xlu0 %v473, 32
    %v476 = vpop.permute.xlu0 %475
    %v478 = vsel %vm167, %v476, 0
    %480 = vmatprep.subr.bf16.mxu0 0
    %481 = vmatpush1.bf16.msra.mxu0 %v163
    %482 = vmatprep.subr.bf16.mxu0 0
    %483 = vmatpush1.bf16.msra.mxu0 %v164
    %484 = vmatprep.subr.bf16.mxu0 0
    %485 = vmatpush1.bf16.msra.mxu0 0
    %486 = vmatprep.subr.bf16.mxu0 0
    %487 = vmatpush1.bf16.msra.mxu0 0
    %488 = vmatprep.subr.bf16.mxu0 0
    %489 = vmatpush1.bf16.msra.mxu0 0
    %490 = vmatprep.subr.bf16.mxu0 0
    %491 = vmatpush1.bf16.msra.mxu0 0
    %492 = vmatprep.subr.bf16.mxu0 0
    %493 = vmatpush1.bf16.msra.mxu0 0
    %494 = vmatprep.subr.bf16.mxu0 0
    %495 = vmatpush1.bf16.msra.mxu0 0
    %496 = vmatprep.subr.bf16.mxu0 0
    %497 = vmatpush1.bf16.msra.mxu0 0
    %498 = vmatprep.subr.bf16.mxu0 0
    %499 = vmatpush1.bf16.msra.mxu0 0
    %500 = vmatprep.subr.bf16.mxu0 0
    %501 = vmatpush1.bf16.msra.mxu0 0
    %502 = vmatprep.subr.bf16.mxu0 0
    %503 = vmatpush1.bf16.msra.mxu0 0
    %504 = vmatprep.subr.bf16.mxu0 0
    %505 = vmatpush1.bf16.msra.mxu0 0
    %506 = vmatprep.subr.bf16.mxu0 0
    %507 = vmatpush1.bf16.msra.mxu0 0
    %508 = vmatprep.subr.bf16.mxu0 0
    %509 = vmatpush1.bf16.msra.mxu0 0
    %510 = vmatprep.subr.bf16.mxu0 0
    %511 = vmatpush1.bf16.msra.mxu0 0
    %512 = vmatprep.mubr.bf16.mxu0 0
    %513 = vmatmul.mubr.bf16.gmra.mrb[0].mxu0 %v478
    %v514 = vpop.f32.mrb[0].mxu0
    %v515 = vadd.f32 0.0, %v514
    %v516 = vpop.f32.mrb[0].mxu0
    %v517 = vpop.f32.mrb[0].mxu0
    %v518 = vpop.f32.mrb[0].mxu0
    %519 = vdwg.mxu0
    %v520 = vadd.f32 %v150, %v515
    %v521 = vxor.u32 %v520, 2147483648
    %v522 = vmul.f32 %v521, 1.442695
    %v523 = vpow.pop %v522
    %v524 = vadd.f32 %v523, 1.0
    %v525 = vrcp.pop %v524
    %v526 = vmul.f32 1.0, %v525
    %v527 = vtanh.pop %v520
    %v528 = vmul.f32 %v526, %v461
    %530 = vrot.lane.b32.xlu0 %v527, 64
    %v531 = vpop.permute.xlu0 %530
    %v533 = vmul.f32 %v526, %v531
    %535 = vrot.lane.b32.xlu0 %v533, 32
    %v536 = vpop.permute.xlu0 %535
    %v538 = vadd.f32 %v528, %v536
    %v539 = vtanh.pop %v538
    %541 = vrot.lane.b32.xlu0 %v539, 64
    %v542 = vpop.permute.xlu0 %541
    %v544 = vmul.f32 %v526, %v542
    %546 = vrot.lane.b32.xlu0 %v544, 32
    %v547 = vpop.permute.xlu0 %546
    %549 = vst.msk [vmem:[#allocation2 + $0x4] sm:$0x1] %vm240, %v547
    %v550 = vpack.c.bf16 %v544, %v544
    %552 = vrot.lane.b32.xlu0 %v550, 32
    %v553 = vpop.permute.xlu0 %552
    %v555 = vsel %vm167, %v553, 0
    %557 = vmatprep.subr.bf16.mxu0 0
    %558 = vmatpush1.bf16.msra.mxu0 %v163
    %559 = vmatprep.subr.bf16.mxu0 0
    %560 = vmatpush1.bf16.msra.mxu0 %v164
    %561 = vmatprep.subr.bf16.mxu0 0
    %562 = vmatpush1.bf16.msra.mxu0 0
    %563 = vmatprep.subr.bf16.mxu0 0
    %564 = vmatpush1.bf16.msra.mxu0 0
    %565 = vmatprep.subr.bf16.mxu0 0
    %566 = vmatpush1.bf16.msra.mxu0 0
    %567 = vmatprep.subr.bf16.mxu0 0
    %568 = vmatpush1.bf16.msra.mxu0 0
    %569 = vmatprep.subr.bf16.mxu0 0
    %570 = vmatpush1.bf16.msra.mxu0 0
    %571 = vmatprep.subr.bf16.mxu0 0
    %572 = vmatpush1.bf16.msra.mxu0 0
    %573 = vmatprep.subr.bf16.mxu0 0
    %574 = vmatpush1.bf16.msra.mxu0 0
    %575 = vmatprep.subr.bf16.mxu0 0
    %576 = vmatpush1.bf16.msra.mxu0 0
    %577 = vmatprep.subr.bf16.mxu0 0
    %578 = vmatpush1.bf16.msra.mxu0 0
    %579 = vmatprep.subr.bf16.mxu0 0
    %580 = vmatpush1.bf16.msra.mxu0 0
    %581 = vmatprep.subr.bf16.mxu0 0
    %582 = vmatpush1.bf16.msra.mxu0 0
    %583 = vmatprep.subr.bf16.mxu0 0
    %584 = vmatpush1.bf16.msra.mxu0 0
    %585 = vmatprep.subr.bf16.mxu0 0
    %586 = vmatpush1.bf16.msra.mxu0 0
    %587 = vmatprep.subr.bf16.mxu0 0
    %588 = vmatpush1.bf16.msra.mxu0 0
    %589 = vmatprep.mubr.bf16.mxu0 0
    %590 = vmatmul.mubr.bf16.gmra.mrb[0].mxu0 %v555
    %v591 = vpop.f32.mrb[0].mxu0
    %v592 = vadd.f32 0.0, %v591
    %v593 = vpop.f32.mrb[0].mxu0
    %v594 = vpop.f32.mrb[0].mxu0
    %v595 = vpop.f32.mrb[0].mxu0
    %596 = vdwg.mxu0
    %v597 = vadd.f32 %v150, %v592
    %v598 = vxor.u32 %v597, 2147483648
    %v599 = vmul.f32 %v598, 1.442695
    %v600 = vpow.pop %v599
    %v601 = vadd.f32 %v600, 1.0
    %v602 = vrcp.pop %v601
    %v603 = vmul.f32 1.0, %v602
    %v604 = vtanh.pop %v597
    %v605 = vmul.f32 %v603, %v538
    %607 = vrot.lane.b32.xlu0 %v604, 64
    %v608 = vpop.permute.xlu0 %607
    %v610 = vmul.f32 %v603, %v608
    %612 = vrot.lane.b32.xlu0 %v610, 32
    %v613 = vpop.permute.xlu0 %612
    %v615 = vadd.f32 %v605, %v613
    %v616 = vtanh.pop %v615
    %618 = vrot.lane.b32.xlu0 %v616, 64
    %v619 = vpop.permute.xlu0 %618
    %v621 = vmul.f32 %v603, %v619
    %623 = vrot.lane.b32.xlu0 %v621, 32
    %v624 = vpop.permute.xlu0 %623
    %626 = vst.msk [vmem:[#allocation2 + $0x5] sm:$0x1] %vm240, %v624
    %v627 = vpack.c.bf16 %v621, %v621
    %629 = vrot.lane.b32.xlu0 %v627, 32
    %v630 = vpop.permute.xlu0 %629
    %v632 = vsel %vm167, %v630, 0
    %634 = vmatprep.subr.bf16.mxu0 0
    %635 = vmatpush1.bf16.msra.mxu0 %v163
    %636 = vmatprep.subr.bf16.mxu0 0
    %637 = vmatpush1.bf16.msra.mxu0 %v164
    %638 = vmatprep.subr.bf16.mxu0 0
    %639 = vmatpush1.bf16.msra.mxu0 0
    %640 = vmatprep.subr.bf16.mxu0 0
    %641 = vmatpush1.bf16.msra.mxu0 0
    %642 = vmatprep.subr.bf16.mxu0 0
    %643 = vmatpush1.bf16.msra.mxu0 0
    %644 = vmatprep.subr.bf16.mxu0 0
    %645 = vmatpush1.bf16.msra.mxu0 0
    %646 = vmatprep.subr.bf16.mxu0 0
    %647 = vmatpush1.bf16.msra.mxu0 0
    %648 = vmatprep.subr.bf16.mxu0 0
    %649 = vmatpush1.bf16.msra.mxu0 0
    %650 = vmatprep.subr.bf16.mxu0 0
    %651 = vmatpush1.bf16.msra.mxu0 0
    %652 = vmatprep.subr.bf16.mxu0 0
    %653 = vmatpush1.bf16.msra.mxu0 0
    %654 = vmatprep.subr.bf16.mxu0 0
    %655 = vmatpush1.bf16.msra.mxu0 0
    %656 = vmatprep.subr.bf16.mxu0 0
    %657 = vmatpush1.bf16.msra.mxu0 0
    %658 = vmatprep.subr.bf16.mxu0 0
    %659 = vmatpush1.bf16.msra.mxu0 0
    %660 = vmatprep.subr.bf16.mxu0 0
    %661 = vmatpush1.bf16.msra.mxu0 0
    %662 = vmatprep.subr.bf16.mxu0 0
    %663 = vmatpush1.bf16.msra.mxu0 0
    %664 = vmatprep.subr.bf16.mxu0 0
    %665 = vmatpush1.bf16.msra.mxu0 0
    %666 = vmatprep.mubr.bf16.mxu0 0
    %667 = vmatmul.mubr.bf16.gmra.mrb[0].mxu0 %v632
    %v668 = vpop.f32.mrb[0].mxu0
    %v669 = vadd.f32 0.0, %v668
    %v670 = vpop.f32.mrb[0].mxu0
    %v671 = vpop.f32.mrb[0].mxu0
    %v672 = vpop.f32.mrb[0].mxu0
    %673 = vdwg.mxu0
    %v674 = vadd.f32 %v150, %v669
    %v675 = vxor.u32 %v674, 2147483648
    %v676 = vmul.f32 %v675, 1.442695
    %v677 = vpow.pop %v676
    %v678 = vadd.f32 %v677, 1.0
    %v679 = vrcp.pop %v678
    %v680 = vmul.f32 1.0, %v679
    %v681 = vtanh.pop %v674
    %v682 = vmul.f32 %v680, %v615
    %684 = vrot.lane.b32.xlu0 %v681, 64
    %v685 = vpop.permute.xlu0 %684
    %v687 = vmul.f32 %v680, %v685
    %689 = vrot.lane.b32.xlu0 %v687, 32
    %v690 = vpop.permute.xlu0 %689
    %v692 = vadd.f32 %v682, %v690
    %v693 = vtanh.pop %v692
    %695 = vrot.lane.b32.xlu0 %v693, 64
    %v696 = vpop.permute.xlu0 %695
    %v698 = vmul.f32 %v680, %v696
    %700 = vrot.lane.b32.xlu0 %v698, 32
    %v701 = vpop.permute.xlu0 %700
    %703 = vst.msk [vmem:[#allocation2 + $0x6] sm:$0x1] %vm240, %v701
    %v704 = vpack.c.bf16 %v698, %v698
    %706 = vrot.lane.b32.xlu0 %v704, 32
    %v707 = vpop.permute.xlu0 %706
    %v709 = vsel %vm167, %v707, 0
    %711 = vmatprep.subr.bf16.mxu0 0
    %712 = vmatpush1.bf16.msra.mxu0 %v163
    %713 = vmatprep.subr.bf16.mxu0 0
    %714 = vmatpush1.bf16.msra.mxu0 %v164
    %715 = vmatprep.subr.bf16.mxu0 0
    %716 = vmatpush1.bf16.msra.mxu0 0
    %717 = vmatprep.subr.bf16.mxu0 0
    %718 = vmatpush1.bf16.msra.mxu0 0
    %719 = vmatprep.subr.bf16.mxu0 0
    %720 = vmatpush1.bf16.msra.mxu0 0
    %721 = vmatprep.subr.bf16.mxu0 0
    %722 = vmatpush1.bf16.msra.mxu0 0
    %723 = vmatprep.subr.bf16.mxu0 0
    %724 = vmatpush1.bf16.msra.mxu0 0
    %725 = vmatprep.subr.bf16.mxu0 0
    %726 = vmatpush1.bf16.msra.mxu0 0
    %727 = vmatprep.subr.bf16.mxu0 0
    %728 = vmatpush1.bf16.msra.mxu0 0
    %729 = vmatprep.subr.bf16.mxu0 0
    %730 = vmatpush1.bf16.msra.mxu0 0
    %731 = vmatprep.subr.bf16.mxu0 0
    %732 = vmatpush1.bf16.msra.mxu0 0
    %733 = vmatprep.subr.bf16.mxu0 0
    %734 = vmatpush1.bf16.msra.mxu0 0
    %735 = vmatprep.subr.bf16.mxu0 0
    %736 = vmatpush1.bf16.msra.mxu0 0
    %737 = vmatprep.subr.bf16.mxu0 0
    %738 = vmatpush1.bf16.msra.mxu0 0
    %739 = vmatprep.subr.bf16.mxu0 0
    %740 = vmatpush1.bf16.msra.mxu0 0
    %741 = vmatprep.subr.bf16.mxu0 0
    %742 = vmatpush1.bf16.msra.mxu0 0
    %743 = vmatprep.mubr.bf16.mxu0 0
    %744 = vmatmul.mubr.bf16.gmra.mrb[0].mxu0 %v709
    %v745 = vpop.f32.mrb[0].mxu0
    %v746 = vadd.f32 0.0, %v745
    %v747 = vpop.f32.mrb[0].mxu0
    %v748 = vpop.f32.mrb[0].mxu0
    %v749 = vpop.f32.mrb[0].mxu0
    %750 = vdwg.mxu0
    %v751 = vadd.f32 %v150, %v746
    %v752 = vxor.u32 %v751, 2147483648
    %v753 = vmul.f32 %v752, 1.442695
    %v754 = vpow.pop %v753
    %v755 = vadd.f32 %v754, 1.0
    %v756 = vrcp.pop %v755
    %v757 = vmul.f32 1.0, %v756
    %v758 = vtanh.pop %v751
    %v759 = vmul.f32 %v757, %v692
    %761 = vrot.lane.b32.xlu0 %v758, 64
    %v762 = vpop.permute.xlu0 %761
    %v764 = vmul.f32 %v757, %v762
    %766 = vrot.lane.b32.xlu0 %v764, 32
    %v767 = vpop.permute.xlu0 %766
    %v769 = vadd.f32 %v759, %v767
    %v770 = vtanh.pop %v769
    %772 = vrot.lane.b32.xlu0 %v770, 64
    %v773 = vpop.permute.xlu0 %772
    %v775 = vmul.f32 %v757, %v773
    %777 = vrot.lane.b32.xlu0 %v775, 32
    %v778 = vpop.permute.xlu0 %777
    %780 = vst.msk [vmem:[#allocation2 + $0x7] sm:$0x1] %vm240, %v778
    %v781 = vld [vmem:[#allocation11] sm:$0xf]
    %v782 = vld [vmem:[#allocation11 + $0x4] sm:$0xf]
    %v783 = vld [vmem:[#allocation11 + $0x8] sm:$0xf]
    %v784 = vld [vmem:[#allocation11 + $0xc] sm:$0xf]
    %v785 = vld [vmem:[%s5] sm:$0xf]
    %v786 = vld [vmem:[%s5 + $0x4] sm:$0xf]
    %v787 = vld [vmem:[%s5 + $0x8] sm:$0xf]
    %v788 = vld [vmem:[%s5 + $0xc] sm:$0xf]
    %v789 = vld [vmem:[%s6] sm:$0x1]
    %v790 = vld [vmem:[#allocation2] sm:$0xff]
    %v791 = vxor.u32 %v790, 2147483648
    %v792 = vmul.f32 %v791, 1.442695
    %v793 = vpow.pop %v792
    %v794 = vadd.f32 %v793, 1.0
    %v795 = vrcp.pop %v794
    %v796 = vmul.f32 1.0, %v795
    %v797 = vpack.c.bf16 %v796, %v796
    %v799 = vlaneseq
    %v800 = vshrl.u32 %v799, 7
    %v801 = vsub.s32 0, %v800
    %v802 = vrot.slane %v789, %v801
    %v808 = vunpack.c.l.b16 %v781
    %v809 = vunpack.c.l.b16 %v782
    %v810 = vunpack.c.l.b16 %v783
    %v811 = vunpack.c.l.b16 %v784
    %v812 = vpack.c.b16 %v809, %v808
    %v813 = vpack.c.b16 %v811, %v810
    %v817 = vsel %vm167, %v797, 0
    %819 = vmatprep.subr.bf16.mxu0 0
    %820 = vmatpush1.bf16.msra.mxu0 %v812
    %821 = vmatprep.subr.bf16.mxu0 0
    %822 = vmatpush1.bf16.msra.mxu0 %v813
    %823 = vmatprep.subr.bf16.mxu0 0
    %824 = vmatpush1.bf16.msra.mxu0 0
    %825 = vmatprep.subr.bf16.mxu0 0
    %826 = vmatpush1.bf16.msra.mxu0 0
    %827 = vmatprep.subr.bf16.mxu0 0
    %828 = vmatpush1.bf16.msra.mxu0 0
    %829 = vmatprep.subr.bf16.mxu0 0
    %830 = vmatpush1.bf16.msra.mxu0 0
    %831 = vmatprep.subr.bf16.mxu0 0
    %832 = vmatpush1.bf16.msra.mxu0 0
    %833 = vmatprep.subr.bf16.mxu0 0
    %834 = vmatpush1.bf16.msra.mxu0 0
    %835 = vmatprep.subr.bf16.mxu0 0
    %836 = vmatpush1.bf16.msra.mxu0 0
    %837 = vmatprep.subr.bf16.mxu0 0
    %838 = vmatpush1.bf16.msra.mxu0 0
    %839 = vmatprep.subr.bf16.mxu0 0
    %840 = vmatpush1.bf16.msra.mxu0 0
    %841 = vmatprep.subr.bf16.mxu0 0
    %842 = vmatpush1.bf16.msra.mxu0 0
    %843 = vmatprep.subr.bf16.mxu0 0
    %844 = vmatpush1.bf16.msra.mxu0 0
    %845 = vmatprep.subr.bf16.mxu0 0
    %846 = vmatpush1.bf16.msra.mxu0 0
    %847 = vmatprep.subr.bf16.mxu0 0
    %848 = vmatpush1.bf16.msra.mxu0 0
    %849 = vmatprep.subr.bf16.mxu0 0
    %850 = vmatpush1.bf16.msra.mxu0 0
    %851 = vmatprep.mubr.bf16.mxu0 0
    %852 = vmatmul.mubr.bf16.gmra.mrb[0].mxu0 %v817
    %v853 = vpop.f32.mrb[0].mxu0
    %v854 = vadd.f32 %v802, %v853
    %v855 = vpop.f32.mrb[0].mxu0
    %v856 = vpop.f32.mrb[0].mxu0
    %v857 = vpop.f32.mrb[0].mxu0
    %858 = vdwg.mxu0
    %859 = vst [vmem:[#allocation4] sm:$0xff] %v854
    %v860 = vld [vmem:[#allocation4] sm:$0x1]
    %v865 = vunpack.c.l.b16 %v785
    %v866 = vunpack.c.l.b16 %v786
    %v867 = vunpack.c.l.b16 %v787
    %v868 = vunpack.c.l.b16 %v788
    %v869 = vpack.c.b16 %v866, %v865
    %v870 = vpack.c.b16 %v868, %v867
    %873 = vmatprep.subr.bf16.mxu0 0
    %874 = vmatpush1.bf16.msra.mxu0 %v869
    %875 = vmatprep.subr.bf16.mxu0 0
    %876 = vmatpush1.bf16.msra.mxu0 %v870
    %877 = vmatprep.subr.bf16.mxu0 0
    %878 = vmatpush1.bf16.msra.mxu0 0
    %879 = vmatprep.subr.bf16.mxu0 0
    %880 = vmatpush1.bf16.msra.mxu0 0
    %881 = vmatprep.subr.bf16.mxu0 0
    %882 = vmatpush1.bf16.msra.mxu0 0
    %883 = vmatprep.subr.bf16.mxu0 0
    %884 = vmatpush1.bf16.msra.mxu0 0
    %885 = vmatprep.subr.bf16.mxu0 0
    %886 = vmatpush1.bf16.msra.mxu0 0
    %887 = vmatprep.subr.bf16.mxu0 0
    %888 = vmatpush1.bf16.msra.mxu0 0
    %889 = vmatprep.subr.bf16.mxu0 0
    %890 = vmatpush1.bf16.msra.mxu0 0
    %891 = vmatprep.subr.bf16.mxu0 0
    %892 = vmatpush1.bf16.msra.mxu0 0
    %893 = vmatprep.subr.bf16.mxu0 0
    %894 = vmatpush1.bf16.msra.mxu0 0
    %895 = vmatprep.subr.bf16.mxu0 0
    %896 = vmatpush1.bf16.msra.mxu0 0
    %897 = vmatprep.subr.bf16.mxu0 0
    %898 = vmatpush1.bf16.msra.mxu0 0
    %899 = vmatprep.subr.bf16.mxu0 0
    %900 = vmatpush1.bf16.msra.mxu0 0
    %901 = vmatprep.subr.bf16.mxu0 0
    %902 = vmatpush1.bf16.msra.mxu0 0
    %903 = vmatprep.subr.bf16.mxu0 0
    %904 = vmatpush1.bf16.msra.mxu0 0
    %905 = vmatprep.mubr.bf16.mxu0 0
    %906 = vmatmul.mubr.bf16.gmra.mrb[0].mxu0 %v169
    %v907 = vpop.f32.mrb[0].mxu0
    %v908 = vadd.f32 0.0, %v907
    %v909 = vpop.f32.mrb[0].mxu0
    %v910 = vpop.f32.mrb[0].mxu0
    %v911 = vpop.f32.mrb[0].mxu0
    %912 = vdwg.mxu0
    %v913 = vadd.f32 %v860, %v908
    %v914 = vxor.u32 %v913, 2147483648
    %v915 = vmul.f32 %v914, 1.442695
    %v916 = vpow.pop %v915
    %v917 = vadd.f32 %v916, 1.0
    %v918 = vrcp.pop %v917
    %v919 = vmul.f32 1.0, %v918
    %v920 = vtanh.pop %v913
    %v921 = vmul.f32 %v919, 0.0
    %923 = vrot.lane.b32.xlu0 %v920, 64
    %v924 = vpop.permute.xlu0 %923
    %v926 = vmul.f32 %v919, %v924
    %928 = vrot.lane.b32.xlu0 %v926, 32
    %v929 = vpop.permute.xlu0 %928
    %v931 = vadd.f32 %v921, %v929
    %v932 = vtanh.pop %v931
    %934 = vrot.lane.b32.xlu0 %v932, 64
    %v935 = vpop.permute.xlu0 %934
    %v937 = vmul.f32 %v919, %v935
    %939 = vrot.lane.b32.xlu0 %v937, 32
    %v940 = vpop.permute.xlu0 %939
    %942 = vst.msk [vmem:[#allocation3] sm:$0x1] %vm240, %v940
    %v943 = vld [vmem:[#allocation4 + $0x1] sm:$0x1]
    %v944 = vpack.c.bf16 %v937, %v937
    %946 = vrot.lane.b32.xlu0 %v944, 32
    %v947 = vpop.permute.xlu0 %946
    %v949 = vsel %vm167, %v947, 0
    %951 = vmatprep.subr.bf16.mxu0 0
    %952 = vmatpush1.bf16.msra.mxu0 %v869
    %953 = vmatprep.subr.bf16.mxu0 0
    %954 = vmatpush1.bf16.msra.mxu0 %v870
    %955 = vmatprep.subr.bf16.mxu0 0
    %956 = vmatpush1.bf16.msra.mxu0 0
    %957 = vmatprep.subr.bf16.mxu0 0
    %958 = vmatpush1.bf16.msra.mxu0 0
    %959 = vmatprep.subr.bf16.mxu0 0
    %960 = vmatpush1.bf16.msra.mxu0 0
    %961 = vmatprep.subr.bf16.mxu0 0
    %962 = vmatpush1.bf16.msra.mxu0 0
    %963 = vmatprep.subr.bf16.mxu0 0
    %964 = vmatpush1.bf16.msra.mxu0 0
    %965 = vmatprep.subr.bf16.mxu0 0
    %966 = vmatpush1.bf16.msra.mxu0 0
    %967 = vmatprep.subr.bf16.mxu0 0
    %968 = vmatpush1.bf16.msra.mxu0 0
    %969 = vmatprep.subr.bf16.mxu0 0
    %970 = vmatpush1.bf16.msra.mxu0 0
    %971 = vmatprep.subr.bf16.mxu0 0
    %972 = vmatpush1.bf16.msra.mxu0 0
    %973 = vmatprep.subr.bf16.mxu0 0
    %974 = vmatpush1.bf16.msra.mxu0 0
    %975 = vmatprep.subr.bf16.mxu0 0
    %976 = vmatpush1.bf16.msra.mxu0 0
    %977 = vmatprep.subr.bf16.mxu0 0
    %978 = vmatpush1.bf16.msra.mxu0 0
    %979 = vmatprep.subr.bf16.mxu0 0
    %980 = vmatpush1.bf16.msra.mxu0 0
    %981 = vmatprep.subr.bf16.mxu0 0
    %982 = vmatpush1.bf16.msra.mxu0 0
    %983 = vmatprep.mubr.bf16.mxu0 0
    %984 = vmatmul.mubr.bf16.gmra.mrb[0].mxu0 %v949
    %v985 = vpop.f32.mrb[0].mxu0
    %v986 = vadd.f32 0.0, %v985
    %v987 = vpop.f32.mrb[0].mxu0
    %v988 = vpop.f32.mrb[0].mxu0
    %v989 = vpop.f32.mrb[0].mxu0
    %990 = vdwg.mxu0
    %v991 = vadd.f32 %v943, %v986
    %v992 = vxor.u32 %v991, 2147483648
    %v993 = vmul.f32 %v992, 1.442695
    %v994 = vpow.pop %v993
    %v995 = vadd.f32 %v994, 1.0
    %v996 = vrcp.pop %v995
    %v997 = vmul.f32 1.0, %v996
    %v998 = vtanh.pop %v991
    %v999 = vmul.f32 %v997, %v931
    %1001 = vrot.lane.b32.xlu0 %v998, 64
    %v1002 = vpop.permute.xlu0 %1001
    %v1004 = vmul.f32 %v997, %v1002
    %1006 = vrot.lane.b32.xlu0 %v1004, 32
    %v1007 = vpop.permute.xlu0 %1006
    %v1009 = vadd.f32 %v999, %v1007
    %v1010 = vtanh.pop %v1009
    %1012 = vrot.lane.b32.xlu0 %v1010, 64
    %v1013 = vpop.permute.xlu0 %1012
    %v1015 = vmul.f32 %v997, %v1013
    %1017 = vrot.lane.b32.xlu0 %v1015, 32
    %v1018 = vpop.permute.xlu0 %1017
    %1020 = vst.msk [vmem:[#allocation3 + $0x1] sm:$0x1] %vm240, %v1018
    %v1021 = vld [vmem:[#allocation4 + $0x2] sm:$0x1]
    %v1022 = vpack.c.bf16 %v1015, %v1015
    %1024 = vrot.lane.b32.xlu0 %v1022, 32
    %v1025 = vpop.permute.xlu0 %1024
    %v1027 = vsel %vm167, %v1025, 0
    %1029 = vmatprep.subr.bf16.mxu0 0
    %1030 = vmatpush1.bf16.msra.mxu0 %v869
    %1031 = vmatprep.subr.bf16.mxu0 0
    %1032 = vmatpush1.bf16.msra.mxu0 %v870
    %1033 = vmatprep.subr.bf16.mxu0 0
    %1034 = vmatpush1.bf16.msra.mxu0 0
    %1035 = vmatprep.subr.bf16.mxu0 0
    %1036 = vmatpush1.bf16.msra.mxu0 0
    %1037 = vmatprep.subr.bf16.mxu0 0
    %1038 = vmatpush1.bf16.msra.mxu0 0
    %1039 = vmatprep.subr.bf16.mxu0 0
    %1040 = vmatpush1.bf16.msra.mxu0 0
    %1041 = vmatprep.subr.bf16.mxu0 0
    %1042 = vmatpush1.bf16.msra.mxu0 0
    %1043 = vmatprep.subr.bf16.mxu0 0
    %1044 = vmatpush1.bf16.msra.mxu0 0
    %1045 = vmatprep.subr.bf16.mxu0 0
    %1046 = vmatpush1.bf16.msra.mxu0 0
    %1047 = vmatprep.subr.bf16.mxu0 0
    %1048 = vmatpush1.bf16.msra.mxu0 0
    %1049 = vmatprep.subr.bf16.mxu0 0
    %1050 = vmatpush1.bf16.msra.mxu0 0
    %1051 = vmatprep.subr.bf16.mxu0 0
    %1052 = vmatpush1.bf16.msra.mxu0 0
    %1053 = vmatprep.subr.bf16.mxu0 0
    %1054 = vmatpush1.bf16.msra.mxu0 0
    %1055 = vmatprep.subr.bf16.mxu0 0
    %1056 = vmatpush1.bf16.msra.mxu0 0
    %1057 = vmatprep.subr.bf16.mxu0 0
    %1058 = vmatpush1.bf16.msra.mxu0 0
    %1059 = vmatprep.subr.bf16.mxu0 0
    %1060 = vmatpush1.bf16.msra.mxu0 0
    %1061 = vmatprep.mubr.bf16.mxu0 0
    %1062 = vmatmul.mubr.bf16.gmra.mrb[0].mxu0 %v1027
    %v1063 = vpop.f32.mrb[0].mxu0
    %v1064 = vadd.f32 0.0, %v1063
    %v1065 = vpop.f32.mrb[0].mxu0
    %v1066 = vpop.f32.mrb[0].mxu0
    %v1067 = vpop.f32.mrb[0].mxu0
    %1068 = vdwg.mxu0
    %v1069 = vadd.f32 %v1021, %v1064
    %v1070 = vxor.u32 %v1069, 2147483648
    %v1071 = vmul.f32 %v1070, 1.442695
    %v1072 = vpow.pop %v1071
    %v1073 = vadd.f32 %v1072, 1.0
    %v1074 = vrcp.pop %v1073
    %v1075 = vmul.f32 1.0, %v1074
    %v1076 = vtanh.pop %v1069
    %v1077 = vmul.f32 %v1075, %v1009
    %1079 = vrot.lane.b32.xlu0 %v1076, 64
    %v1080 = vpop.permute.xlu0 %1079
    %v1082 = vmul.f32 %v1075, %v1080
    %1084 = vrot.lane.b32.xlu0 %v1082, 32
    %v1085 = vpop.permute.xlu0 %1084
    %v1087 = vadd.f32 %v1077, %v1085
    %v1088 = vtanh.pop %v1087
    %1090 = vrot.lane.b32.xlu0 %v1088, 64
    %v1091 = vpop.permute.xlu0 %1090
    %v1093 = vmul.f32 %v1075, %v1091
    %1095 = vrot.lane.b32.xlu0 %v1093, 32
    %v1096 = vpop.permute.xlu0 %1095
    %1098 = vst.msk [vmem:[#allocation3 + $0x2] sm:$0x1] %vm240, %v1096
    %v1099 = vld [vmem:[#allocation4 + $0x3] sm:$0x1]
    %v1100 = vpack.c.bf16 %v1093, %v1093
    %1102 = vrot.lane.b32.xlu0 %v1100, 32
    %v1103 = vpop.permute.xlu0 %1102
    %v1105 = vsel %vm167, %v1103, 0
    %1107 = vmatprep.subr.bf16.mxu0 0
    %1108 = vmatpush1.bf16.msra.mxu0 %v869
    %1109 = vmatprep.subr.bf16.mxu0 0
    %1110 = vmatpush1.bf16.msra.mxu0 %v870
    %1111 = vmatprep.subr.bf16.mxu0 0
    %1112 = vmatpush1.bf16.msra.mxu0 0
    %1113 = vmatprep.subr.bf16.mxu0 0
    %1114 = vmatpush1.bf16.msra.mxu0 0
    %1115 = vmatprep.subr.bf16.mxu0 0
    %1116 = vmatpush1.bf16.msra.mxu0 0
    %1117 = vmatprep.subr.bf16.mxu0 0
    %1118 = vmatpush1.bf16.msra.mxu0 0
    %1119 = vmatprep.subr.bf16.mxu0 0
    %1120 = vmatpush1.bf16.msra.mxu0 0
    %1121 = vmatprep.subr.bf16.mxu0 0
    %1122 = vmatpush1.bf16.msra.mxu0 0
    %1123 = vmatprep.subr.bf16.mxu0 0
    %1124 = vmatpush1.bf16.msra.mxu0 0
    %1125 = vmatprep.subr.bf16.mxu0 0
    %1126 = vmatpush1.bf16.msra.mxu0 0
    %1127 = vmatprep.subr.bf16.mxu0 0
    %1128 = vmatpush1.bf16.msra.mxu0 0
    %1129 = vmatprep.subr.bf16.mxu0 0
    %1130 = vmatpush1.bf16.msra.mxu0 0
    %1131 = vmatprep.subr.bf16.mxu0 0
    %1132 = vmatpush1.bf16.msra.mxu0 0
    %1133 = vmatprep.subr.bf16.mxu0 0
    %1134 = vmatpush1.bf16.msra.mxu0 0
    %1135 = vmatprep.subr.bf16.mxu0 0
    %1136 = vmatpush1.bf16.msra.mxu0 0
    %1137 = vmatprep.subr.bf16.mxu0 0
    %1138 = vmatpush1.bf16.msra.mxu0 0
    %1139 = vmatprep.mubr.bf16.mxu0 0
    %1140 = vmatmul.mubr.bf16.gmra.mrb[0].mxu0 %v1105
    %v1141 = vpop.f32.mrb[0].mxu0
    %v1142 = vadd.f32 0.0, %v1141
    %v1143 = vpop.f32.mrb[0].mxu0
    %v1144 = vpop.f32.mrb[0].mxu0
    %v1145 = vpop.f32.mrb[0].mxu0
    %1146 = vdwg.mxu0
    %v1147 = vadd.f32 %v1099, %v1142
    %v1148 = vxor.u32 %v1147, 2147483648
    %v1149 = vmul.f32 %v1148, 1.442695
    %v1150 = vpow.pop %v1149
    %v1151 = vadd.f32 %v1150, 1.0
    %v1152 = vrcp.pop %v1151
    %v1153 = vmul.f32 1.0, %v1152
    %v1154 = vtanh.pop %v1147
    %v1155 = vmul.f32 %v1153, %v1087
    %1157 = vrot.lane.b32.xlu0 %v1154, 64
    %v1158 = vpop.permute.xlu0 %1157
    %v1160 = vmul.f32 %v1153, %v1158
    %1162 = vrot.lane.b32.xlu0 %v1160, 32
    %v1163 = vpop.permute.xlu0 %1162
    %v1165 = vadd.f32 %v1155, %v1163
    %v1166 = vtanh.pop %v1165
    %1168 = vrot.lane.b32.xlu0 %v1166, 64
    %v1169 = vpop.permute.xlu0 %1168
    %v1171 = vmul.f32 %v1153, %v1169
    %1173 = vrot.lane.b32.xlu0 %v1171, 32
    %v1174 = vpop.permute.xlu0 %1173
    %1176 = vst.msk [vmem:[#allocation3 + $0x3] sm:$0x1] %vm240, %v1174
    %v1177 = vld [vmem:[#allocation4 + $0x4] sm:$0x1]
    %v1178 = vpack.c.bf16 %v1171, %v1171
    %1180 = vrot.lane.b32.xlu0 %v1178, 32
    %v1181 = vpop.permute.xlu0 %1180
    %v1183 = vsel %vm167, %v1181, 0
    %1185 = vmatprep.subr.bf16.mxu0 0
    %1186 = vmatpush1.bf16.msra.mxu0 %v869
    %1187 = vmatprep.subr.bf16.mxu0 0
    %1188 = vmatpush1.bf16.msra.mxu0 %v870
    %1189 = vmatprep.subr.bf16.mxu0 0
    %1190 = vmatpush1.bf16.msra.mxu0 0
    %1191 = vmatprep.subr.bf16.mxu0 0
    %1192 = vmatpush1.bf16.msra.mxu0 0
    %1193 = vmatprep.subr.bf16.mxu0 0
    %1194 = vmatpush1.bf16.msra.mxu0 0
    %1195 = vmatprep.subr.bf16.mxu0 0
    %1196 = vmatpush1.bf16.msra.mxu0 0
    %1197 = vmatprep.subr.bf16.mxu0 0
    %1198 = vmatpush1.bf16.msra.mxu0 0
    %1199 = vmatprep.subr.bf16.mxu0 0
    %1200 = vmatpush1.bf16.msra.mxu0 0
    %1201 = vmatprep.subr.bf16.mxu0 0
    %1202 = vmatpush1.bf16.msra.mxu0 0
    %1203 = vmatprep.subr.bf16.mxu0 0
    %1204 = vmatpush1.bf16.msra.mxu0 0
    %1205 = vmatprep.subr.bf16.mxu0 0
    %1206 = vmatpush1.bf16.msra.mxu0 0
    %1207 = vmatprep.subr.bf16.mxu0 0
    %1208 = vmatpush1.bf16.msra.mxu0 0
    %1209 = vmatprep.subr.bf16.mxu0 0
    %1210 = vmatpush1.bf16.msra.mxu0 0
    %1211 = vmatprep.subr.bf16.mxu0 0
    %1212 = vmatpush1.bf16.msra.mxu0 0
    %1213 = vmatprep.subr.bf16.mxu0 0
    %1214 = vmatpush1.bf16.msra.mxu0 0
    %1215 = vmatprep.subr.bf16.mxu0 0
    %1216 = vmatpush1.bf16.msra.mxu0 0
    %1217 = vmatprep.mubr.bf16.mxu0 0
    %1218 = vmatmul.mubr.bf16.gmra.mrb[0].mxu0 %v1183
    %v1219 = vpop.f32.mrb[0].mxu0
    %v1220 = vadd.f32 0.0, %v1219
    %v1221 = vpop.f32.mrb[0].mxu0
    %v1222 = vpop.f32.mrb[0].mxu0
    %v1223 = vpop.f32.mrb[0].mxu0
    %1224 = vdwg.mxu0
    %v1225 = vadd.f32 %v1177, %v1220
    %v1226 = vxor.u32 %v1225, 2147483648
    %v1227 = vmul.f32 %v1226, 1.442695
    %v1228 = vpow.pop %v1227
    %v1229 = vadd.f32 %v1228, 1.0
    %v1230 = vrcp.pop %v1229
    %v1231 = vmul.f32 1.0, %v1230
    %v1232 = vtanh.pop %v1225
    %v1233 = vmul.f32 %v1231, %v1165
    %1235 = vrot.lane.b32.xlu0 %v1232, 64
    %v1236 = vpop.permute.xlu0 %1235
    %v1238 = vmul.f32 %v1231, %v1236
    %1240 = vrot.lane.b32.xlu0 %v1238, 32
    %v1241 = vpop.permute.xlu0 %1240
    %v1243 = vadd.f32 %v1233, %v1241
    %v1244 = vtanh.pop %v1243
    %1246 = vrot.lane.b32.xlu0 %v1244, 64
    %v1247 = vpop.permute.xlu0 %1246
    %v1249 = vmul.f32 %v1231, %v1247
    %1251 = vrot.lane.b32.xlu0 %v1249, 32
    %v1252 = vpop.permute.xlu0 %1251
    %1254 = vst.msk [vmem:[#allocation3 + $0x4] sm:$0x1] %vm240, %v1252
    %v1255 = vld [vmem:[#allocation4 + $0x5] sm:$0x1]
    %v1256 = vpack.c.bf16 %v1249, %v1249
    %1258 = vrot.lane.b32.xlu0 %v1256, 32
    %v1259 = vpop.permute.xlu0 %1258
    %v1261 = vsel %vm167, %v1259, 0
    %1263 = vmatprep.subr.bf16.mxu0 0
    %1264 = vmatpush1.bf16.msra.mxu0 %v869
    %1265 = vmatprep.subr.bf16.mxu0 0
    %1266 = vmatpush1.bf16.msra.mxu0 %v870
    %1267 = vmatprep.subr.bf16.mxu0 0
    %1268 = vmatpush1.bf16.msra.mxu0 0
    %1269 = vmatprep.subr.bf16.mxu0 0
    %1270 = vmatpush1.bf16.msra.mxu0 0
    %1271 = vmatprep.subr.bf16.mxu0 0
    %1272 = vmatpush1.bf16.msra.mxu0 0
    %1273 = vmatprep.subr.bf16.mxu0 0
    %1274 = vmatpush1.bf16.msra.mxu0 0
    %1275 = vmatprep.subr.bf16.mxu0 0
    %1276 = vmatpush1.bf16.msra.mxu0 0
    %1277 = vmatprep.subr.bf16.mxu0 0
    %1278 = vmatpush1.bf16.msra.mxu0 0
    %1279 = vmatprep.subr.bf16.mxu0 0
    %1280 = vmatpush1.bf16.msra.mxu0 0
    %1281 = vmatprep.subr.bf16.mxu0 0
    %1282 = vmatpush1.bf16.msra.mxu0 0
    %1283 = vmatprep.subr.bf16.mxu0 0
    %1284 = vmatpush1.bf16.msra.mxu0 0
    %1285 = vmatprep.subr.bf16.mxu0 0
    %1286 = vmatpush1.bf16.msra.mxu0 0
    %1287 = vmatprep.subr.bf16.mxu0 0
    %1288 = vmatpush1.bf16.msra.mxu0 0
    %1289 = vmatprep.subr.bf16.mxu0 0
    %1290 = vmatpush1.bf16.msra.mxu0 0
    %1291 = vmatprep.subr.bf16.mxu0 0
    %1292 = vmatpush1.bf16.msra.mxu0 0
    %1293 = vmatprep.subr.bf16.mxu0 0
    %1294 = vmatpush1.bf16.msra.mxu0 0
    %1295 = vmatprep.mubr.bf16.mxu0 0
    %1296 = vmatmul.mubr.bf16.gmra.mrb[0].mxu0 %v1261
    %v1297 = vpop.f32.mrb[0].mxu0
    %v1298 = vadd.f32 0.0, %v1297
    %v1299 = vpop.f32.mrb[0].mxu0
    %v1300 = vpop.f32.mrb[0].mxu0
    %v1301 = vpop.f32.mrb[0].mxu0
    %1302 = vdwg.mxu0
    %v1303 = vadd.f32 %v1255, %v1298
    %v1304 = vxor.u32 %v1303, 2147483648
    %v1305 = vmul.f32 %v1304, 1.442695
    %v1306 = vpow.pop %v1305
    %v1307 = vadd.f32 %v1306, 1.0
    %v1308 = vrcp.pop %v1307
    %v1309 = vmul.f32 1.0, %v1308
    %v1310 = vtanh.pop %v1303
    %v1311 = vmul.f32 %v1309, %v1243
    %1313 = vrot.lane.b32.xlu0 %v1310, 64
    %v1314 = vpop.permute.xlu0 %1313
    %v1316 = vmul.f32 %v1309, %v1314
    %1318 = vrot.lane.b32.xlu0 %v1316, 32
    %v1319 = vpop.permute.xlu0 %1318
    %v1321 = vadd.f32 %v1311, %v1319
    %v1322 = vtanh.pop %v1321
    %1324 = vrot.lane.b32.xlu0 %v1322, 64
    %v1325 = vpop.permute.xlu0 %1324
    %v1327 = vmul.f32 %v1309, %v1325
    %1329 = vrot.lane.b32.xlu0 %v1327, 32
    %v1330 = vpop.permute.xlu0 %1329
    %1332 = vst.msk [vmem:[#allocation3 + $0x5] sm:$0x1] %vm240, %v1330
    %v1333 = vld [vmem:[#allocation4 + $0x6] sm:$0x1]
    %v1334 = vpack.c.bf16 %v1327, %v1327
    %1336 = vrot.lane.b32.xlu0 %v1334, 32
    %v1337 = vpop.permute.xlu0 %1336
    %v1339 = vsel %vm167, %v1337, 0
    %1341 = vmatprep.subr.bf16.mxu0 0
    %1342 = vmatpush1.bf16.msra.mxu0 %v869
    %1343 = vmatprep.subr.bf16.mxu0 0
    %1344 = vmatpush1.bf16.msra.mxu0 %v870
    %1345 = vmatprep.subr.bf16.mxu0 0
    %1346 = vmatpush1.bf16.msra.mxu0 0
    %1347 = vmatprep.subr.bf16.mxu0 0
    %1348 = vmatpush1.bf16.msra.mxu0 0
    %1349 = vmatprep.subr.bf16.mxu0 0
    %1350 = vmatpush1.bf16.msra.mxu0 0
    %1351 = vmatprep.subr.bf16.mxu0 0
    %1352 = vmatpush1.bf16.msra.mxu0 0
    %1353 = vmatprep.subr.bf16.mxu0 0
    %1354 = vmatpush1.bf16.msra.mxu0 0
    %1355 = vmatprep.subr.bf16.mxu0 0
    %1356 = vmatpush1.bf16.msra.mxu0 0
    %1357 = vmatprep.subr.bf16.mxu0 0
    %1358 = vmatpush1.bf16.msra.mxu0 0
    %1359 = vmatprep.subr.bf16.mxu0 0
    %1360 = vmatpush1.bf16.msra.mxu0 0
    %1361 = vmatprep.subr.bf16.mxu0 0
    %1362 = vmatpush1.bf16.msra.mxu0 0
    %1363 = vmatprep.subr.bf16.mxu0 0
    %1364 = vmatpush1.bf16.msra.mxu0 0
    %1365 = vmatprep.subr.bf16.mxu0 0
    %1366 = vmatpush1.bf16.msra.mxu0 0
    %1367 = vmatprep.subr.bf16.mxu0 0
    %1368 = vmatpush1.bf16.msra.mxu0 0
    %1369 = vmatprep.subr.bf16.mxu0 0
    %1370 = vmatpush1.bf16.msra.mxu0 0
    %1371 = vmatprep.subr.bf16.mxu0 0
    %1372 = vmatpush1.bf16.msra.mxu0 0
    %1373 = vmatprep.mubr.bf16.mxu0 0
    %1374 = vmatmul.mubr.bf16.gmra.mrb[0].mxu0 %v1339
    %v1375 = vpop.f32.mrb[0].mxu0
    %v1376 = vadd.f32 0.0, %v1375
    %v1377 = vpop.f32.mrb[0].mxu0
    %v1378 = vpop.f32.mrb[0].mxu0
    %v1379 = vpop.f32.mrb[0].mxu0
    %1380 = vdwg.mxu0
    %v1381 = vadd.f32 %v1333, %v1376
    %v1382 = vxor.u32 %v1381, 2147483648
    %v1383 = vmul.f32 %v1382, 1.442695
    %v1384 = vpow.pop %v1383
    %v1385 = vadd.f32 %v1384, 1.0
    %v1386 = vrcp.pop %v1385
    %v1387 = vmul.f32 1.0, %v1386
    %v1388 = vtanh.pop %v1381
    %v1389 = vmul.f32 %v1387, %v1321
    %1391 = vrot.lane.b32.xlu0 %v1388, 64
    %v1392 = vpop.permute.xlu0 %1391
    %v1394 = vmul.f32 %v1387, %v1392
    %1396 = vrot.lane.b32.xlu0 %v1394, 32
    %v1397 = vpop.permute.xlu0 %1396
    %v1399 = vadd.f32 %v1389, %v1397
    %v1400 = vtanh.pop %v1399
    %1402 = vrot.lane.b32.xlu0 %v1400, 64
    %v1403 = vpop.permute.xlu0 %1402
    %v1405 = vmul.f32 %v1387, %v1403
    %1407 = vrot.lane.b32.xlu0 %v1405, 32
    %v1408 = vpop.permute.xlu0 %1407
    %1410 = vst.msk [vmem:[#allocation3 + $0x6] sm:$0x1] %vm240, %v1408
    %v1411 = vld [vmem:[#allocation4 + $0x7] sm:$0x1]
    %v1412 = vpack.c.bf16 %v1405, %v1405
    %1414 = vrot.lane.b32.xlu0 %v1412, 32
    %v1415 = vpop.permute.xlu0 %1414
    %v1417 = vsel %vm167, %v1415, 0
    %1419 = vmatprep.subr.bf16.mxu0 0
    %1420 = vmatpush1.bf16.msra.mxu0 %v869
    %1421 = vmatprep.subr.bf16.mxu0 0
    %1422 = vmatpush1.bf16.msra.mxu0 %v870
    %1423 = vmatprep.subr.bf16.mxu0 0
    %1424 = vmatpush1.bf16.msra.mxu0 0
    %1425 = vmatprep.subr.bf16.mxu0 0
    %1426 = vmatpush1.bf16.msra.mxu0 0
    %1427 = vmatprep.subr.bf16.mxu0 0
    %1428 = vmatpush1.bf16.msra.mxu0 0
    %1429 = vmatprep.subr.bf16.mxu0 0
    %1430 = vmatpush1.bf16.msra.mxu0 0
    %1431 = vmatprep.subr.bf16.mxu0 0
    %1432 = vmatpush1.bf16.msra.mxu0 0
    %1433 = vmatprep.subr.bf16.mxu0 0
    %1434 = vmatpush1.bf16.msra.mxu0 0
    %1435 = vmatprep.subr.bf16.mxu0 0
    %1436 = vmatpush1.bf16.msra.mxu0 0
    %1437 = vmatprep.subr.bf16.mxu0 0
    %1438 = vmatpush1.bf16.msra.mxu0 0
    %1439 = vmatprep.subr.bf16.mxu0 0
    %1440 = vmatpush1.bf16.msra.mxu0 0
    %1441 = vmatprep.subr.bf16.mxu0 0
    %1442 = vmatpush1.bf16.msra.mxu0 0
    %1443 = vmatprep.subr.bf16.mxu0 0
    %1444 = vmatpush1.bf16.msra.mxu0 0
    %1445 = vmatprep.subr.bf16.mxu0 0
    %1446 = vmatpush1.bf16.msra.mxu0 0
    %1447 = vmatprep.subr.bf16.mxu0 0
    %1448 = vmatpush1.bf16.msra.mxu0 0
    %1449 = vmatprep.subr.bf16.mxu0 0
    %1450 = vmatpush1.bf16.msra.mxu0 0
    %1451 = vmatprep.mubr.bf16.mxu0 0
    %1452 = vmatmul.mubr.bf16.gmra.mrb[0].mxu0 %v1417
    %v1453 = vpop.f32.mrb[0].mxu0
    %v1454 = vadd.f32 0.0, %v1453
    %v1455 = vpop.f32.mrb[0].mxu0
    %v1456 = vpop.f32.mrb[0].mxu0
    %v1457 = vpop.f32.mrb[0].mxu0
    %1458 = vdwg.mxu0
    %v1459 = vadd.f32 %v1411, %v1454
    %v1460 = vxor.u32 %v1459, 2147483648
    %v1461 = vmul.f32 %v1460, 1.442695
    %v1462 = vpow.pop %v1461
    %v1463 = vadd.f32 %v1462, 1.0
    %v1464 = vrcp.pop %v1463
    %v1465 = vmul.f32 1.0, %v1464
    %v1466 = vtanh.pop %v1459
    %v1467 = vmul.f32 %v1465, %v1399
    %1469 = vrot.lane.b32.xlu0 %v1466, 64
    %v1470 = vpop.permute.xlu0 %1469
    %v1472 = vmul.f32 %v1465, %v1470
    %1474 = vrot.lane.b32.xlu0 %v1472, 32
    %v1475 = vpop.permute.xlu0 %1474
    %v1477 = vadd.f32 %v1467, %v1475
    %v1478 = vtanh.pop %v1477
    %1480 = vrot.lane.b32.xlu0 %v1478, 64
    %v1481 = vpop.permute.xlu0 %1480
    %v1483 = vmul.f32 %v1465, %v1481
    %1485 = vrot.lane.b32.xlu0 %v1483, 32
    %v1486 = vpop.permute.xlu0 %1485
    %1488 = vst.msk [vmem:[#allocation3 + $0x7] sm:$0x1] %vm240, %v1486
    %v1489 = vld [vmem:[#allocation3] sm:$0xff]
    %v1490 = vpack.c.bf16 %v1489, %v1489
    %v1491 = vld [vmem:[#allocation13] sm:$0xf]
    %v1492 = vld [vmem:[#allocation13 + $0x4] sm:$0xf]
    %v1493 = vld [vmem:[#allocation13 + $0x8] sm:$0xf]
    %v1494 = vld [vmem:[#allocation13 + $0xc] sm:$0xf]
    %v1499 = vunpack.c.l.b16 %v1491
    %v1500 = vunpack.c.l.b16 %v1492
    %v1501 = vunpack.c.l.b16 %v1493
    %v1502 = vunpack.c.l.b16 %v1494
    %v1503 = vpack.c.b16 %v1500, %v1499
    %v1504 = vpack.c.b16 %v1502, %v1501
    %v1508 = vsel %vm167, %v1490, 0
    %1510 = vmatprep.subr.bf16.mxu0 0
    %1511 = vmatpush1.bf16.msra.mxu0 %v1503
    %1512 = vmatprep.subr.bf16.mxu0 0
    %1513 = vmatpush1.bf16.msra.mxu0 %v1504
    %1514 = vmatprep.subr.bf16.mxu0 0
    %1515 = vmatpush1.bf16.msra.mxu0 0
    %1516 = vmatprep.subr.bf16.mxu0 0
    %1517 = vmatpush1.bf16.msra.mxu0 0
    %1518 = vmatprep.subr.bf16.mxu0 0
    %1519 = vmatpush1.bf16.msra.mxu0 0
    %1520 = vmatprep.subr.bf16.mxu0 0
    %1521 = vmatpush1.bf16.msra.mxu0 0
    %1522 = vmatprep.subr.bf16.mxu0 0
    %1523 = vmatpush1.bf16.msra.mxu0 0
    %1524 = vmatprep.subr.bf16.mxu0 0
    %1525 = vmatpush1.bf16.msra.mxu0 0
    %1526 = vmatprep.subr.bf16.mxu0 0
    %1527 = vmatpush1.bf16.msra.mxu0 0
    %1528 = vmatprep.subr.bf16.mxu0 0
    %1529 = vmatpush1.bf16.msra.mxu0 0
    %1530 = vmatprep.subr.bf16.mxu0 0
    %1531 = vmatpush1.bf16.msra.mxu0 0
    %1532 = vmatprep.subr.bf16.mxu0 0
    %1533 = vmatpush1.bf16.msra.mxu0 0
    %1534 = vmatprep.subr.bf16.mxu0 0
    %1535 = vmatpush1.bf16.msra.mxu0 0
    %1536 = vmatprep.subr.bf16.mxu0 0
    %1537 = vmatpush1.bf16.msra.mxu0 0
    %1538 = vmatprep.subr.bf16.mxu0 0
    %1539 = vmatpush1.bf16.msra.mxu0 0
    %1540 = vmatprep.subr.bf16.mxu0 0
    %1541 = vmatpush1.bf16.msra.mxu0 0
    %1542 = vmatprep.mubr.bf16.mxu0 0
    %1543 = vmatmul.mubr.bf16.gmra.mrb[0].mxu0 %v1508
    %v1544 = vpop.f32.mrb[0].mxu0
    %v1545 = vadd.f32 0.0, %v1544
    %v1546 = vpop.f32.mrb[0].mxu0
    %v1547 = vpop.f32.mrb[0].mxu0
    %v1548 = vpop.f32.mrb[0].mxu0
    %1549 = vdwg.mxu0
    %1550 = vst [vmem:[#allocation14] sm:$0xff] %v1545
    // Predicated region
    $region54: #{tpu_custom_call.1} parent=1 // pred_check
      _
    $region55: #{tpu_custom_call.1} parent=1 // pred_check_branch
      %1552 = sbr.rel (0) target = $region57
    $region56: #{tpu_custom_call.1} parent=1 // pred_region
      %s1554 = ssub.s32 128, 128
      %1555 = vsyncadd [#allocation7], %s1554
      %s1557 = sshll.u32 [#allocation14], 4
      %s1558 = int_to_ptr.vmem [resolvable:$true] %s1557
      %1560 = dma.vmem_to_hbm [thread:$0]  %s1558, 128, %s8, [#allocation7]
    $region57: #{tpu_custom_call.1} parent=1 // pred_fallthru
      _
    // Predicated region
    $region58: #{tpu_custom_call.1} parent=1 // pred_check
      _
    $region59: #{tpu_custom_call.1} parent=1 // pred_check_branch
      %1562 = sbr.rel (0) target = $region61
    $region60: #{tpu_custom_call.1} parent=1 // pred_region
      %1563 = dma.done [#allocation7], 128
    $region61: #{tpu_custom_call.1} parent=1 // pred_fallthru
      _
    %1564 = vsyncpa [#allocation6], 1
    %1565 = vsyncpa [#allocation9], 1
    %1566 = vsyncpa [#allocation12], 1
    %1567 = vsyncpa [#allocation7], 1

</llo_original>
